<compile_context>
chip_gen: v6e
topology: v6e:2x2x1
jax: 0.10.0
libtpu: 0.0.40
codegen_flags: <defaults>
</compile_context>

<pallas_src>
import functools
import numpy as np
import jax
import jax.numpy as jnp
from jax import lax
from jax.experimental import pallas as pl
from jax.experimental.pallas import tpu as pltpu

# ----------------------------- config (synthetic, small) --------------------
SR = 16000
WIN = 400            # 25 ms window
HOP = 160            # 10 ms hop -> downsample rate 160
N_FREQ = WIN // 2 + 1
N_MEL = 40           # feat_dim
HIDDEN = 32          # APC GRU hidden size
NUM_LAYERS = 3
RESIDUAL = True

# padded (lane/sublane dense) sizes
WIN_P = 512          # 400  -> 512  (frame width / DFT rows)
F_P = 256            # 201  -> 256  (freq bins)
M_P = 128            # 40/32 -> 128 (feature / hidden lane width)
GP = 128             # each GRU gate gets its own 128-lane block
G3 = 3 * GP          # padded gate width (r|z|n blocks)
B_P = 8              # batch padded to 8 sublanes

IN_DIMS = [N_MEL] + [HIDDEN] * (NUM_LAYERS - 1)


def _vmem_spec():
    return pl.BlockSpec(memory_space=pltpu.MemorySpace.VMEM)


# ------------- Kernel 1: batched log-mel + fused per-utterance CMVN ---------
def _logmel_cmvn_kernel(frames_ref, win_ref, dr_ref, di_ref, mel_ref,
                        assign_ref, assign_t_ref, inv_cnt_ref, row_valid_ref,
                        out_ref):
    # frames_ref: [BT_P, WIN_P] time-major rows (row = t*B_P + b), zero-padded.
    fw = frames_ref[...] * win_ref[...]                                # [BT_P, WIN_P]
    re = jnp.dot(fw, dr_ref[...], preferred_element_type=jnp.float32)  # [BT_P, F_P]
    im = jnp.dot(fw, di_ref[...], preferred_element_type=jnp.float32)
    power = re * re + im * im
    feat = jnp.log(jnp.dot(power, mel_ref[...],
                           preferred_element_type=jnp.float32) + 1e-6)  # [BT_P, M_P]
    # masked per-wav CMVN (population std), fused epilogue
    sums = jnp.dot(assign_t_ref[...], feat, preferred_element_type=jnp.float32)   # [B_P, M_P]
    sumsq = jnp.dot(assign_t_ref[...], feat * feat,
                    preferred_element_type=jnp.float32)
    mean = sums * inv_cnt_ref[...]
    var = jnp.maximum(sumsq * inv_cnt_ref[...] - mean * mean, 0.0)
    std = jnp.sqrt(var)
    mean_rows = jnp.dot(assign_ref[...], mean, preferred_element_type=jnp.float32)  # [BT_P, M_P]
    std_rows = jnp.dot(assign_ref[...], std, preferred_element_type=jnp.float32)
    out_ref[...] = ((feat - mean_rows) / (std_rows + 1e-8)) * row_valid_ref[...]


def logmel_cmvn(frames, window, dft_re, dft_im, mel_fb,
                assign, assign_t, inv_cnt, row_valid):
    bt_p = frames.shape[0]
    return pl.pallas_call(
        _logmel_cmvn_kernel,
        out_shape=jax.ShapeDtypeStruct((bt_p, M_P), jnp.float32),
        in_specs=[_vmem_spec()] * 9,
        out_specs=_vmem_spec(),
    )(frames, window, dft_re, dft_im, mel_fb, assign, assign_t, inv_cnt, row_valid)


# ---------- Kernel 2: fused APC (proj + all GRU layers + residual + postnet) --
def _apc_kernel(x_ref, wih_ref, bih_ref, whh_ref, bhh_ref, wpost_ref, bpost_ref,
                feat_ref, pred_ref, cur_scr, gates_scr, seq_scr, h_scr, *, T):
    # x_ref: [T*B_P, M_P] time-major padded features (row = t*B_P + b).
    cur_scr[...] = x_ref[...]

    for l in range(NUM_LAYERS):                     # static layer unroll
        wih = wih_ref[l]                            # [M_P, G3]
        bih = bih_ref[l]                            # [1,  G3]
        whh = whh_ref[l]                            # [M_P, G3]
        bhh = bhh_ref[l]                            # [1,  G3]

        # fused input projection for all timesteps/batch lanes at once
        gates_scr[...] = jnp.dot(cur_scr[...], wih,
                                 preferred_element_type=jnp.float32) + bih
        h_scr[...] = jnp.zeros_like(h_scr)          # PyTorch default h0 = 0

        def body(t, carry, whh=whh, bhh=bhh):
            off = pl.multiple_of(t * B_P, B_P)
            gx = gates_scr[pl.ds(off, B_P), :]      # [B_P, G3]
            h = h_scr[...]                          # [B_P, M_P]
            gh = jnp.dot(h, whh, preferred_element_type=jnp.float32) + bhh
            r = jax.nn.sigmoid(gx[:, 0:GP] + gh[:, 0:GP])
            z = jax.nn.sigmoid(gx[:, GP:2 * GP] + gh[:, GP:2 * GP])
            n = jnp.tanh(gx[:, 2 * GP:3 * GP] + r * gh[:, 2 * GP:3 * GP])
            h_new = (1.0 - z) * n + z * h
            h_scr[...] = h_new
            seq_scr[pl.ds(off, B_P), :] = h_new     # sublane-aligned [8,128] store
            return carry

        lax.fori_loop(0, T, body, 0, unroll=True)

        if RESIDUAL and IN_DIMS[l] == HIDDEN:       # residual only when dims match
            cur_scr[...] = seq_scr[...] + cur_scr[...]
        else:
            cur_scr[...] = seq_scr[...]

    feat_ref[...] = cur_scr[...]
    pred_ref[...] = (jnp.dot(cur_scr[...], wpost_ref[...],
                             preferred_element_type=jnp.float32) + bpost_ref[...])


def apc_fused(feat_tm, packed, T_max):
    bt_p = feat_tm.shape[0]
    wih_p, bih_p, whh_p, bhh_p, wpost_p, bpost_p = packed
    kernel = functools.partial(_apc_kernel, T=T_max)
    feat_out, pred_out = pl.pallas_call(
        kernel,
        out_shape=(jax.ShapeDtypeStruct((bt_p, M_P), jnp.float32),
                   jax.ShapeDtypeStruct((bt_p, M_P), jnp.float32)),
        in_specs=[_vmem_spec()] * 7,
        out_specs=(_vmem_spec(), _vmem_spec()),
        scratch_shapes=[pltpu.VMEM((bt_p, M_P), jnp.float32),   # cur (layer input)
                        pltpu.VMEM((bt_p, G3), jnp.float32),    # projected gates
                        pltpu.VMEM((bt_p, M_P), jnp.float32),   # layer output seq
                        pltpu.VMEM((B_P, M_P), jnp.float32)],   # hidden state
    )(feat_tm, wih_p, bih_p, whh_p, bhh_p, wpost_p, bpost_p)
    return feat_out, pred_out


# ----------------------------- preprocessor glue ----------------------------
def build_analysis_matrices():
    # TODO(synk): exact Kaldi fbank params (dither, preemphasis, snip-edges) not
    # reproduced; deterministic log-mel + CMVN stand-in for create_transform.
    n = np.arange(WIN, dtype=np.float64)
    window = np.zeros((1, WIN_P), np.float32)
    window[0, :WIN] = 0.54 - 0.46 * np.cos(2.0 * np.pi * n / (WIN - 1))

    k = np.arange(N_FREQ, dtype=np.float64)
    ang = 2.0 * np.pi * np.outer(n, k) / WIN
    dft_re = np.zeros((WIN_P, F_P), np.float32)
    dft_im = np.zeros((WIN_P, F_P), np.float32)
    dft_re[:WIN, :N_FREQ] = np.cos(ang)
    dft_im[:WIN, :N_FREQ] = -np.sin(ang)

    def hz_to_mel(f): return 2595.0 * np.log10(1.0 + f / 700.0)
    def mel_to_hz(m): return 700.0 * (10.0 ** (m / 2595.0) - 1.0)
    mel_pts = np.linspace(hz_to_mel(0.0), hz_to_mel(SR / 2.0), N_MEL + 2)
    bins = np.floor(WIN * mel_to_hz(mel_pts) / SR).astype(int)
    fb = np.zeros((F_P, M_P), np.float32)
    for m in range(1, N_MEL + 1):
        lo, c, hi = bins[m - 1], bins[m], bins[m + 1]
        for kk in range(lo, c):
            if c > lo:
                fb[kk, m - 1] = (kk - lo) / (c - lo)
        for kk in range(c, hi):
            if hi > c:
                fb[kk, m - 1] = (hi - kk) / (hi - c)

    return (jnp.asarray(window), jnp.asarray(dft_re),
            jnp.asarray(dft_im), jnp.asarray(fb))


def build_frames_and_masks(wavs):
    """Pack all wavs' frames into one time-major [T_max*B_P, WIN_P] slab plus
    the CMVN masking matrices (valid-frame -> wav assignment)."""
    B = len(wavs)
    assert B <= B_P
    lens = [1 + (int(w.shape[0]) - WIN) // HOP for w in wavs]
    T_max = max(lens)
    bt_p = T_max * B_P

    frames = jnp.zeros((bt_p, WIN_P), jnp.float32)
    assign = np.zeros((bt_p, B_P), np.float32)
    row_valid = np.zeros((bt_p, 1), np.float32)
    inv_cnt = np.zeros((B_P, 1), np.float32)
    for b, w in enumerate(wavs):
        Tb = lens[b]
        # TODO(synk): framing gather stays in XLA glue; for long audio move it
        # in-kernel with pl.ds strided slices to avoid the 2.5x HBM expansion.
        idx = np.arange(Tb)[:, None] * HOP + np.arange(WIN)[None, :]
        fr = w[idx]                                   # [Tb, WIN]
        rows = np.arange(Tb) * B_P + b                # time-major row placement
        frames = frames.at[rows, :WIN].set(fr)
        assign[rows, b] = 1.0
        row_valid[rows, 0] = 1.0
        inv_cnt[b, 0] = 1.0 / Tb

    return (frames, jnp.asarray(assign), jnp.asarray(assign.T.copy()),
            jnp.asarray(inv_cnt), jnp.asarray(row_valid), lens, T_max)


# ----------------------------- APC params ------------------------------------
def init_params(key):
    """PyTorch-layout GRU / Linear params (gate order r|z|n)."""
    params = {'rnn': [], 'postnet': None}
    bound = 1.0 / np.sqrt(HIDDEN)
    k = key
    for l in range(NUM_LAYERS):
        k, k1, k2, k3, k4 = jax.random.split(k, 5)
        W_ih = jax.random.uniform(k1, (3 * HIDDEN, IN_DIMS[l]), jnp.float32, -bound, bound)
        b_ih = jax.random.uniform(k2, (3 * HIDDEN,), jnp.float32, -bound, bound)
        W_hh = jax.random.uniform(k3, (3 * HIDDEN, HIDDEN), jnp.float32, -bound, bound)
        b_hh = jax.random.uniform(k4, (3 * HIDDEN,), jnp.float32, -bound, bound)
        params['rnn'].append((W_ih, b_ih, W_hh, b_hh))
    k, k1, k2 = jax.random.split(k, 3)
    W_post = jax.random.uniform(k1, (N_MEL, HIDDEN), jnp.float32, -bound, bound)
    b_post = jax.random.uniform(k2, (N_MEL,), jnp.float32, -bound, bound)
    params['postnet'] = (W_post, b_post)
    return params


def pack_params(params):
    """Pad + transpose into lane-dense stacked weights for the fused kernel.
    Each gate occupies its own 128-lane block so r/z/n slices are tile-aligned."""
    H = HIDDEN
    wih_p = np.zeros((NUM_LAYERS, M_P, G3), np.float32)
    bih_p = np.zeros((NUM_LAYERS, 1, G3), np.float32)
    whh_p = np.zeros((NUM_LAYERS, M_P, G3), np.float32)
    bhh_p = np.zeros((NUM_LAYERS, 1, G3), np.float32)
    for l, (W_ih, b_ih, W_hh, b_hh) in enumerate(params['rnn']):
        W_ih = np.asarray(W_ih); b_ih = np.asarray(b_ih)
        W_hh = np.asarray(W_hh); b_hh = np.asarray(b_hh)
        d_in = W_ih.shape[1]
        for g in range(3):
            wih_p[l, :d_in, g * GP:g * GP + H] = W_ih[g * H:(g + 1) * H, :].T
            bih_p[l, 0, g * GP:g * GP + H] = b_ih[g * H:(g + 1) * H]
            whh_p[l, :H, g * GP:g * GP + H] = W_hh[g * H:(g + 1) * H, :].T
            bhh_p[l, 0, g * GP:g * GP + H] = b_hh[g * H:(g + 1) * H]
    W_post, b_post = params['postnet']
    wpost_p = np.zeros((M_P, M_P), np.float32)
    wpost_p[:H, :N_MEL] = np.asarray(W_post).T
    bpost_p = np.zeros((1, M_P), np.float32)
    bpost_p[0, :N_MEL] = np.asarray(b_post)
    return tuple(jnp.asarray(a) for a in
                 (wih_p, bih_p, whh_p, bhh_p, wpost_p, bpost_p))


# ----------------------------- full forward ----------------------------------
def upstream_expert_forward(wavs, packed, analysis):
    window, dft_re, dft_im, mel_fb = analysis
    B = len(wavs)
    (frames, assign, assign_t, inv_cnt, row_valid,
     lens, T_max) = build_frames_and_masks(wavs)

    # one kernel: log-mel + per-utterance CMVN for ALL wavs, time-major output
    feat_tm = logmel_cmvn(frames, window, dft_re, dft_im, mel_fb,
                          assign, assign_t, inv_cnt, row_valid)   # [T_max*B_P, 128]

    # one kernel: input proj + all GRU layers + residual + postnet
    feat_out, pred_out = apc_fused(feat_tm, packed, T_max)

    feats = feat_out.reshape(T_max, B_P, M_P).transpose(1, 0, 2)[:B, :, :HIDDEN]
    pred = pred_out.reshape(T_max, B_P, M_P).transpose(1, 0, 2)[:B, :, :N_MEL]
    return [feats[i, :lens[i]] for i in range(B)], pred


# ----------------------------------- main ------------------------------------
if __name__ == "__main__":
    key = jax.random.PRNGKey(0)
    kp, kw1, kw2 = jax.random.split(key, 3)
    params = init_params(kp)
    packed = pack_params(params)
    analysis = build_analysis_matrices()

    # two unpadded wavs (16 kHz), different lengths -> 9 and 6 frames
    wavs = [jax.random.normal(kw1, (1680,), jnp.float32),
            jax.random.normal(kw2, (1200,), jnp.float32)]

    feats_list, predicted = upstream_expert_forward(wavs, packed, analysis)

    jax.block_until_ready(predicted)
    for f in feats_list:
        jax.block_until_ready(f)

    assert feats_list[0].shape == (9, HIDDEN)
    assert feats_list[1].shape == (6, HIDDEN)
    assert predicted.shape == (2, 9, N_MEL)
    assert all(bool(jnp.isfinite(f).all()) for f in feats_list)
    assert bool(jnp.isfinite(predicted).all())
    print("KERNEL_OK")
</pallas_src>

<mosaic_0001>
module attributes {stable_mosaic.version = 11 : i64} {
  func.func @_logmel_cmvn_kernel(%arg0: memref<72x512xf32, #tpu.memory_space<vmem>>, %arg1: memref<1x512xf32, #tpu.memory_space<vmem>>, %arg2: memref<512x256xf32, #tpu.memory_space<vmem>>, %arg3: memref<512x256xf32, #tpu.memory_space<vmem>>, %arg4: memref<256x128xf32, #tpu.memory_space<vmem>>, %arg5: memref<72x8xf32, #tpu.memory_space<vmem>>, %arg6: memref<8x72xf32, #tpu.memory_space<vmem>>, %arg7: memref<8x1xf32, #tpu.memory_space<vmem>>, %arg8: memref<72x1xf32, #tpu.memory_space<vmem>>, %arg9: memref<72x128xf32, #tpu.memory_space<vmem>>) attributes {dimension_semantics = [], scalar_prefetch = 0 : i64, scratch_operands = 0 : i64, tpu.core_type = #tpu.core_type<tc>} {
    %c0 = arith.constant 0 : index
    %c0_0 = arith.constant 0 : index
    %0 = vector.load %arg0[%c0, %c0_0] : memref<72x512xf32, #tpu.memory_space<vmem>>, vector<72x512xf32>
    %c0_1 = arith.constant 0 : index
    %c0_2 = arith.constant 0 : index
    %1 = vector.load %arg1[%c0_1, %c0_2] : memref<1x512xf32, #tpu.memory_space<vmem>>, vector<1x512xf32>
    %2 = vector.broadcast %1 : vector<1x512xf32> to vector<72x512xf32>
    %3 = arith.mulf %0, %2 : vector<72x512xf32>
    %c0_3 = arith.constant 0 : index
    %c0_4 = arith.constant 0 : index
    %4 = vector.load %arg2[%c0_3, %c0_4] : memref<512x256xf32, #tpu.memory_space<vmem>>, vector<512x256xf32>
    %cst = arith.constant dense<0.000000e+00> : vector<72x256xf32>
    %5 = tpu.matmul %3, %4, %cst {dimension_numbers = #tpu.dot_dimension_numbers<[1], [0], [0], [1], [0, 0, 1, 1], [], []>} : vector<72x512xf32>, vector<512x256xf32>, vector<72x256xf32> -> vector<72x256xf32>
    %c0_5 = arith.constant 0 : index
    %c0_6 = arith.constant 0 : index
    %6 = vector.load %arg3[%c0_5, %c0_6] : memref<512x256xf32, #tpu.memory_space<vmem>>, vector<512x256xf32>
    %cst_7 = arith.constant dense<0.000000e+00> : vector<72x256xf32>
    %7 = tpu.matmul %3, %6, %cst_7 {dimension_numbers = #tpu.dot_dimension_numbers<[1], [0], [0], [1], [0, 0, 1, 1], [], []>} : vector<72x512xf32>, vector<512x256xf32>, vector<72x256xf32> -> vector<72x256xf32>
    %8 = arith.mulf %5, %5 : vector<72x256xf32>
    %9 = arith.mulf %7, %7 : vector<72x256xf32>
    %10 = arith.addf %8, %9 : vector<72x256xf32>
    %c0_8 = arith.constant 0 : index
    %c0_9 = arith.constant 0 : index
    %11 = vector.load %arg4[%c0_8, %c0_9] : memref<256x128xf32, #tpu.memory_space<vmem>>, vector<256x128xf32>
    %cst_10 = arith.constant dense<0.000000e+00> : vector<72x128xf32>
    %12 = tpu.matmul %10, %11, %cst_10 {dimension_numbers = #tpu.dot_dimension_numbers<[1], [0], [0], [1], [0, 0, 1, 1], [], []>} : vector<72x256xf32>, vector<256x128xf32>, vector<72x128xf32> -> vector<72x128xf32>
    %cst_11 = arith.constant 9.99999997E-7 : f32
    %13 = vector.broadcast %cst_11 : f32 to vector<72x128xf32>
    %14 = arith.addf %12, %13 : vector<72x128xf32>
    %15 = math.log %14 : vector<72x128xf32>
    %c0_12 = arith.constant 0 : index
    %c0_13 = arith.constant 0 : index
    %16 = vector.load %arg6[%c0_12, %c0_13] : memref<8x72xf32, #tpu.memory_space<vmem>>, vector<8x72xf32>
    %cst_14 = arith.constant dense<0.000000e+00> : vector<8x128xf32>
    %17 = tpu.matmul %16, %15, %cst_14 {dimension_numbers = #tpu.dot_dimension_numbers<[1], [0], [0], [1], [0, 0, 1, 1], [], []>} : vector<8x72xf32>, vector<72x128xf32>, vector<8x128xf32> -> vector<8x128xf32>
    %c0_15 = arith.constant 0 : index
    %c0_16 = arith.constant 0 : index
    %18 = vector.load %arg6[%c0_15, %c0_16] : memref<8x72xf32, #tpu.memory_space<vmem>>, vector<8x72xf32>
    %19 = arith.mulf %15, %15 : vector<72x128xf32>
    %cst_17 = arith.constant dense<0.000000e+00> : vector<8x128xf32>
    %20 = tpu.matmul %18, %19, %cst_17 {dimension_numbers = #tpu.dot_dimension_numbers<[1], [0], [0], [1], [0, 0, 1, 1], [], []>} : vector<8x72xf32>, vector<72x128xf32>, vector<8x128xf32> -> vector<8x128xf32>
    %c0_18 = arith.constant 0 : index
    %c0_19 = arith.constant 0 : index
    %21 = vector.load %arg7[%c0_18, %c0_19] : memref<8x1xf32, #tpu.memory_space<vmem>>, vector<8x1xf32>
    %22 = vector.broadcast %21 : vector<8x1xf32> to vector<8x128xf32>
    %23 = arith.mulf %17, %22 : vector<8x128xf32>
    %c0_20 = arith.constant 0 : index
    %c0_21 = arith.constant 0 : index
    %24 = vector.load %arg7[%c0_20, %c0_21] : memref<8x1xf32, #tpu.memory_space<vmem>>, vector<8x1xf32>
    %25 = vector.broadcast %24 : vector<8x1xf32> to vector<8x128xf32>
    %26 = arith.mulf %20, %25 : vector<8x128xf32>
    %27 = arith.mulf %23, %23 : vector<8x128xf32>
    %28 = arith.subf %26, %27 : vector<8x128xf32>
    %cst_22 = arith.constant 0.000000e+00 : f32
    %29 = vector.broadcast %cst_22 : f32 to vector<8x128xf32>
    %30 = arith.maximumf %28, %29 : vector<8x128xf32>
    %31 = math.sqrt %30 : vector<8x128xf32>
    %c0_23 = arith.constant 0 : index
    %c0_24 = arith.constant 0 : index
    %32 = vector.load %arg5[%c0_23, %c0_24] : memref<72x8xf32, #tpu.memory_space<vmem>>, vector<72x8xf32>
    %cst_25 = arith.constant dense<0.000000e+00> : vector<72x128xf32>
    %33 = tpu.matmul %32, %23, %cst_25 {dimension_numbers = #tpu.dot_dimension_numbers<[1], [0], [0], [1], [0, 0, 1, 1], [], []>} : vector<72x8xf32>, vector<8x128xf32>, vector<72x128xf32> -> vector<72x128xf32>
    %c0_26 = arith.constant 0 : index
    %c0_27 = arith.constant 0 : index
    %34 = vector.load %arg5[%c0_26, %c0_27] : memref<72x8xf32, #tpu.memory_space<vmem>>, vector<72x8xf32>
    %cst_28 = arith.constant dense<0.000000e+00> : vector<72x128xf32>
    %35 = tpu.matmul %34, %31, %cst_28 {dimension_numbers = #tpu.dot_dimension_numbers<[1], [0], [0], [1], [0, 0, 1, 1], [], []>} : vector<72x8xf32>, vector<8x128xf32>, vector<72x128xf32> -> vector<72x128xf32>
    %36 = arith.subf %15, %33 : vector<72x128xf32>
    %cst_29 = arith.constant 9.99999993E-9 : f32
    %37 = vector.broadcast %cst_29 : f32 to vector<72x128xf32>
    %38 = arith.addf %35, %37 : vector<72x128xf32>
    %39 = arith.divf %36, %38 : vector<72x128xf32>
    %c0_30 = arith.constant 0 : index
    %c0_31 = arith.constant 0 : index
    %40 = vector.load %arg8[%c0_30, %c0_31] : memref<72x1xf32, #tpu.memory_space<vmem>>, vector<72x1xf32>
    %41 = vector.broadcast %40 : vector<72x1xf32> to vector<72x128xf32>
    %42 = arith.mulf %39, %41 : vector<72x128xf32>
    %c0_32 = arith.constant 0 : index
    %c0_33 = arith.constant 0 : index
    %43 = vector.load %arg9[%c0_32, %c0_33] : memref<72x128xf32, #tpu.memory_space<vmem>>, vector<72x128xf32>
    tpu.vector_store %arg9[%c0_32, %c0_33], %42 {strides = array<i32>} : memref<72x128xf32, #tpu.memory_space<vmem>>, vector<72x128xf32>,
    return
  }
}

</mosaic_0001>

<llo_original>
// kernel: tpu_custom_call.1
$region0: #{tpu_custom_call.1}
  #allocation0 [shape = 'u32[]', space=smem, size = 0x4, offset = 0x4, fixed_abs, tag = 'smem constant byte address 0x4 - core index']
  #allocation1 [shape = 'u32[144,128]{1,0:T(1,128)}', space=vmem, size = 0x12000, scoped, tag = 'internal scratch']
  %s0 = inlined_call_operand.hbm [shape: f32[72,512], index: 0, kind: input, shape index: {}]
  %s1 = inlined_call_operand.vmem [shape: f32[1,512], index: 1, kind: input, shape index: {}]
  %s2 = inlined_call_operand.hbm [shape: f32[512,256], index: 2, kind: input, shape index: {}]
  %s3 = inlined_call_operand.hbm [shape: f32[512,256], index: 3, kind: input, shape index: {}]
  %s4 = inlined_call_operand.hbm [shape: f32[256,128], index: 4, kind: input, shape index: {}]
  %s5 = inlined_call_operand.vmem [shape: f32[72,8], index: 5, kind: input, shape index: {}]
  %s6 = inlined_call_operand.vmem [shape: f32[8,72], index: 6, kind: input, shape index: {}]
  %s7 = inlined_call_operand.vmem [shape: f32[8,1], index: 7, kind: input, shape index: {}]
  %s8 = inlined_call_operand.vmem [shape: f32[72,1], index: 8, kind: input, shape index: {}]
  %s9 = inlined_call_operand.hbm [shape: f32[72,128], index: 9, kind: output, shape index: {}]
  %s10 = sld [smem:[#allocation0]]
  $region62: #{tpu_custom_call.1} parent=0
    _
  %s12 = ssub.s32 1, %s10
  %s13 = scalar_select 0, %s12, %s10
  $region1: #{tpu_custom_call.1} parent=0
    #allocation2 [shape = 'u8[147456]{0}', space=vmem, size = 0x24000, scoped, tag = 'input window, operand 0, single buffered']
    #allocation3 [shape = 's32[1]{0}', space=sflag, size = 0x4, scoped, tag = 'scoped memory for tpu_custom_call.1']
    #allocation4 [shape = 's32[1]{0}', space=sflag, size = 0x4, scoped, tag = 'scoped memory for tpu_custom_call.1']
    #allocation5 [shape = 'u8[524288]{0}', space=vmem, size = 0x80000, scoped, tag = 'input window, operand 2, single buffered']
    #allocation6 [shape = 's32[1]{0}', space=sflag, size = 0x4, scoped, tag = 'scoped memory for tpu_custom_call.1']
    #allocation7 [shape = 'u8[524288]{0}', space=vmem, size = 0x80000, scoped, tag = 'input window, operand 3, single buffered']
    #allocation8 [shape = 'u8[131072]{0}', space=vmem, size = 0x20000, scoped, tag = 'input window, operand 4, single buffered']
    #allocation9 [shape = 's32[1]{0}', space=sflag, size = 0x4, scoped, tag = 'scoped memory for tpu_custom_call.1']
    #allocation10 [shape = 'u8[36864]{0}', space=vmem, size = 0x9000, scoped, tag = 'output window, operand 0, single buffered']
    %14 = vsyncpa [#allocation3], 0
    %15 = vsyncpa [#allocation6], 0
    %16 = vsyncpa [#allocation9], 0
    %17 = vsyncpa [#allocation4], 0
    // Predicated region
    $region2: #{tpu_custom_call.1} parent=1 // pred_check
      _
    $region3: #{tpu_custom_call.1} parent=1 // pred_check_branch
      %19 = sbr.rel (0) target = $region5
    $region4: #{tpu_custom_call.1} parent=1 // pred_region
      %s21 = ssub.s32 4608, 4608
      %22 = vsyncadd [#allocation3], %s21
      %s23 = sshll.u32 [#allocation2], 4
      %s24 = int_to_ptr.vmem [resolvable:$true] %s23
      %29 = dma.hbm_to_vmem [thread:$0]  %s0, 4608, %s24, [#allocation3], 512, 512, 32
    $region5: #{tpu_custom_call.1} parent=1 // pred_fallthru
      _
    // Predicated region
    $region6: #{tpu_custom_call.1} parent=1 // pred_check
      _
    $region7: #{tpu_custom_call.1} parent=1 // pred_check_branch
      %31 = sbr.rel (0) target = $region9
    $region8: #{tpu_custom_call.1} parent=1 // pred_region
      _
    $region9: #{tpu_custom_call.1} parent=1 // pred_fallthru
      _
    // Predicated region
    $region10: #{tpu_custom_call.1} parent=1 // pred_check
      _
    $region11: #{tpu_custom_call.1} parent=1 // pred_check_branch
      %33 = sbr.rel (0) target = $region13
    $region12: #{tpu_custom_call.1} parent=1 // pred_region
      %s35 = ssub.s32 16384, 16384
      %36 = vsyncadd [#allocation6], %s35
      %s37 = sshll.u32 [#allocation5], 4
      %s38 = int_to_ptr.vmem [resolvable:$true] %s37
      %43 = dma.hbm_to_vmem [thread:$0]  %s2, 16384, %s38, [#allocation6], 256, 256, 16
    $region13: #{tpu_custom_call.1} parent=1 // pred_fallthru
      _
    // Predicated region
    $region14: #{tpu_custom_call.1} parent=1 // pred_check
      _
    $region15: #{tpu_custom_call.1} parent=1 // pred_check_branch
      %45 = sbr.rel (0) target = $region17
    $region16: #{tpu_custom_call.1} parent=1 // pred_region
      %s47 = ssub.s32 16384, 16384
      %48 = vsyncadd [#allocation6], %s47
      %s49 = sshll.u32 [#allocation7], 4
      %s50 = int_to_ptr.vmem [resolvable:$true] %s49
      %55 = dma.hbm_to_vmem [thread:$0]  %s3, 16384, %s50, [#allocation6], 256, 256, 16
    $region17: #{tpu_custom_call.1} parent=1 // pred_fallthru
      _
    // Predicated region
    $region18: #{tpu_custom_call.1} parent=1 // pred_check
      _
    $region19: #{tpu_custom_call.1} parent=1 // pred_check_branch
      %57 = sbr.rel (0) target = $region21
    $region20: #{tpu_custom_call.1} parent=1 // pred_region
      %s59 = ssub.s32 4096, 4096
      %60 = vsyncadd [#allocation9], %s59
      %s61 = sshll.u32 [#allocation8], 4
      %s62 = int_to_ptr.vmem [resolvable:$true] %s61
      %67 = dma.hbm_to_vmem [thread:$0]  %s4, 4096, %s62, [#allocation9], 128, 128, 8
    $region21: #{tpu_custom_call.1} parent=1 // pred_fallthru
      _
    // Predicated region
    $region22: #{tpu_custom_call.1} parent=1 // pred_check
      _
    $region23: #{tpu_custom_call.1} parent=1 // pred_check_branch
      %69 = sbr.rel (0) target = $region25
    $region24: #{tpu_custom_call.1} parent=1 // pred_region
      _
    $region25: #{tpu_custom_call.1} parent=1 // pred_fallthru
      _
    // Predicated region
    $region26: #{tpu_custom_call.1} parent=1 // pred_check
      _
    $region27: #{tpu_custom_call.1} parent=1 // pred_check_branch
      %71 = sbr.rel (0) target = $region29
    $region28: #{tpu_custom_call.1} parent=1 // pred_region
      _
    $region29: #{tpu_custom_call.1} parent=1 // pred_fallthru
      _
    // Predicated region
    $region30: #{tpu_custom_call.1} parent=1 // pred_check
      _
    $region31: #{tpu_custom_call.1} parent=1 // pred_check_branch
      %73 = sbr.rel (0) target = $region33
    $region32: #{tpu_custom_call.1} parent=1 // pred_region
      _
    $region33: #{tpu_custom_call.1} parent=1 // pred_fallthru
      _
    // Predicated region
    $region34: #{tpu_custom_call.1} parent=1 // pred_check
      _
    $region35: #{tpu_custom_call.1} parent=1 // pred_check_branch
      %75 = sbr.rel (0) target = $region37
    $region36: #{tpu_custom_call.1} parent=1 // pred_region
      _
    $region37: #{tpu_custom_call.1} parent=1 // pred_fallthru
      _
    // Predicated region
    $region38: #{tpu_custom_call.1} parent=1 // pred_check
      _
    $region39: #{tpu_custom_call.1} parent=1 // pred_check_branch
      %77 = sbr.rel (0) target = $region41
    $region40: #{tpu_custom_call.1} parent=1 // pred_region
      %78 = dma.done [#allocation3], 4608
    $region41: #{tpu_custom_call.1} parent=1 // pred_fallthru
      _
    // Predicated region
    $region42: #{tpu_custom_call.1} parent=1 // pred_check
      _
    $region43: #{tpu_custom_call.1} parent=1 // pred_check_branch
      %80 = sbr.rel (0) target = $region45
    $region44: #{tpu_custom_call.1} parent=1 // pred_region
      %81 = dma.done [#allocation6], 16384
    $region45: #{tpu_custom_call.1} parent=1 // pred_fallthru
      _
    // Predicated region
    $region46: #{tpu_custom_call.1} parent=1 // pred_check
      _
    $region47: #{tpu_custom_call.1} parent=1 // pred_check_branch
      %83 = sbr.rel (0) target = $region49
    $region48: #{tpu_custom_call.1} parent=1 // pred_region
      %84 = dma.done [#allocation6], 16384
    $region49: #{tpu_custom_call.1} parent=1 // pred_fallthru
      _
    // Predicated region
    $region50: #{tpu_custom_call.1} parent=1 // pred_check
      _
    $region51: #{tpu_custom_call.1} parent=1 // pred_check_branch
      %86 = sbr.rel (0) target = $region53
    $region52: #{tpu_custom_call.1} parent=1 // pred_region
      %87 = dma.done [#allocation9], 4096
    $region53: #{tpu_custom_call.1} parent=1 // pred_fallthru
      _
    %v88 = vld [vmem:[#allocation2] sm:$0xff]
    %v89 = vld [vmem:[#allocation2 + $0x8] sm:$0xff]
    %v90 = vld [vmem:[#allocation2 + $0x10] sm:$0xff]
    %v91 = vld [vmem:[#allocation2 + $0x18] sm:$0xff]
    %v92 = vld [vmem:[#allocation2 + $0x20] sm:$0xff]
    %v93 = vld [vmem:[#allocation2 + $0x28] sm:$0xff]
    %v94 = vld [vmem:[#allocation2 + $0x30] sm:$0xff]
    %v95 = vld [vmem:[#allocation2 + $0x38] sm:$0xff]
    %v96 = vld [vmem:[#allocation2 + $0x40] sm:$0xff]
    %v97 = vld [vmem:[#allocation2 + $0x48] sm:$0xff]
    %v98 = vld [vmem:[#allocation2 + $0x50] sm:$0xff]
    %v99 = vld [vmem:[#allocation2 + $0x58] sm:$0xff]
    %v100 = vld [vmem:[#allocation2 + $0x60] sm:$0xff]
    %v101 = vld [vmem:[#allocation2 + $0x68] sm:$0xff]
    %v102 = vld [vmem:[#allocation2 + $0x70] sm:$0xff]
    %v103 = vld [vmem:[#allocation2 + $0x78] sm:$0xff]
    %v104 = vld [vmem:[#allocation2 + $0x80] sm:$0xff]
    %v105 = vld [vmem:[#allocation2 + $0x88] sm:$0xff]
    %v106 = vld [vmem:[#allocation2 + $0x90] sm:$0xff]
    %v107 = vld [vmem:[#allocation2 + $0x98] sm:$0xff]
    %v108 = vld [vmem:[#allocation2 + $0xa0] sm:$0xff]
    %v109 = vld [vmem:[#allocation2 + $0xa8] sm:$0xff]
    %v110 = vld [vmem:[#allocation2 + $0xb0] sm:$0xff]
    %v111 = vld [vmem:[#allocation2 + $0xb8] sm:$0xff]
    %v112 = vld [vmem:[#allocation2 + $0xc0] sm:$0xff]
    %v113 = vld [vmem:[#allocation2 + $0xc8] sm:$0xff]
    %v114 = vld [vmem:[#allocation2 + $0xd0] sm:$0xff]
    %v115 = vld [vmem:[#allocation2 + $0xd8] sm:$0xff]
    %v116 = vld [vmem:[#allocation2 + $0xe0] sm:$0xff]
    %v117 = vld [vmem:[#allocation2 + $0xe8] sm:$0xff]
    %v118 = vld [vmem:[#allocation2 + $0xf0] sm:$0xff]
    %v119 = vld [vmem:[#allocation2 + $0xf8] sm:$0xff]
    %v120 = vld [vmem:[#allocation2 + $0x100] sm:$0xff]
    %v121 = vld [vmem:[#allocation2 + $0x108] sm:$0xff]
    %v122 = vld [vmem:[#allocation2 + $0x110] sm:$0xff]
    %v123 = vld [vmem:[#allocation2 + $0x118] sm:$0xff]
    %v124 = vld [vmem:[%s1] sm:$0xf]
    %v126 = vlaneseq
    %v127 = vshrl.u32 %v126, 7
    %v128 = vsub.s32 0, %v127
    %v129 = vrot.slane %v124, %v128
    %v130 = vlaneseq
    %v131 = vshrl.u32 %v130, 7
    %v132 = vsub.s32 1, %v131
    %v133 = vrot.slane %v124, %v132
    %v134 = vlaneseq
    %v135 = vshrl.u32 %v134, 7
    %v136 = vsub.s32 2, %v135
    %v137 = vrot.slane %v124, %v136
    %v138 = vlaneseq
    %v139 = vshrl.u32 %v138, 7
    %v140 = vsub.s32 3, %v139
    %v141 = vrot.slane %v124, %v140
    %v146 = vmul.f32 %v88, %v129
    %v147 = vmul.f32 %v89, %v133
    %v148 = vmul.f32 %v90, %v137
    %v149 = vmul.f32 %v91, %v141
    %v150 = vmul.f32 %v92, %v129
    %v151 = vmul.f32 %v93, %v133
    %v152 = vmul.f32 %v94, %v137
    %v153 = vmul.f32 %v95, %v141
    %v154 = vmul.f32 %v96, %v129
    %v155 = vmul.f32 %v97, %v133
    %v156 = vmul.f32 %v98, %v137
    %v157 = vmul.f32 %v99, %v141
    %v158 = vmul.f32 %v100, %v129
    %v159 = vmul.f32 %v101, %v133
    %v160 = vmul.f32 %v102, %v137
    %v161 = vmul.f32 %v103, %v141
    %v162 = vmul.f32 %v104, %v129
    %v163 = vmul.f32 %v105, %v133
    %v164 = vmul.f32 %v106, %v137
    %v165 = vmul.f32 %v107, %v141
    %v166 = vmul.f32 %v108, %v129
    %v167 = vmul.f32 %v109, %v133
    %v168 = vmul.f32 %v110, %v137
    %v169 = vmul.f32 %v111, %v141
    %v170 = vmul.f32 %v112, %v129
    %v171 = vmul.f32 %v113, %v133
    %v172 = vmul.f32 %v114, %v137
    %v173 = vmul.f32 %v115, %v141
    %v174 = vmul.f32 %v116, %v129
    %v175 = vmul.f32 %v117, %v133
    %v176 = vmul.f32 %v118, %v137
    %v177 = vmul.f32 %v119, %v141
    %v178 = vmul.f32 %v120, %v129
    %v179 = vmul.f32 %v121, %v133
    %v180 = vmul.f32 %v122, %v137
    %v181 = vmul.f32 %v123, %v141
    %v182 = vld [vmem:[#allocation5] sm:$0xff]
    %v183 = vld [vmem:[#allocation5 + $0x8] sm:$0xff]
    %v184 = vld [vmem:[#allocation5 + $0x10] sm:$0xff]
    %v185 = vld [vmem:[#allocation5 + $0x18] sm:$0xff]
    %v186 = vld [vmem:[#allocation5 + $0x20] sm:$0xff]
    %v187 = vld [vmem:[#allocation5 + $0x28] sm:$0xff]
    %v188 = vld [vmem:[#allocation5 + $0x30] sm:$0xff]
    %v189 = vld [vmem:[#allocation5 + $0x38] sm:$0xff]
    %v190 = vld [vmem:[#allocation5 + $0x40] sm:$0xff]
    %v191 = vld [vmem:[#allocation5 + $0x48] sm:$0xff]
    %v192 = vld [vmem:[#allocation5 + $0x50] sm:$0xff]
    %v193 = vld [vmem:[#allocation5 + $0x58] sm:$0xff]
    %v194 = vld [vmem:[#allocation5 + $0x60] sm:$0xff]
    %v195 = vld [vmem:[#allocation5 + $0x68] sm:$0xff]
    %v196 = vld [vmem:[#allocation5 + $0x70] sm:$0xff]
    %v197 = vld [vmem:[#allocation5 + $0x78] sm:$0xff]
    %v198 = vld [vmem:[#allocation5 + $0x80] sm:$0xff]
    %v199 = vld [vmem:[#allocation5 + $0x88] sm:$0xff]
    %v200 = vld [vmem:[#allocation5 + $0x90] sm:$0xff]
    %v201 = vld [vmem:[#allocation5 + $0x98] sm:$0xff]
    %v202 = vld [vmem:[#allocation5 + $0xa0] sm:$0xff]
    %v203 = vld [vmem:[#allocation5 + $0xa8] sm:$0xff]
    %v204 = vld [vmem:[#allocation5 + $0xb0] sm:$0xff]
    %v205 = vld [vmem:[#allocation5 + $0xb8] sm:$0xff]
    %v206 = vld [vmem:[#allocation5 + $0xc0] sm:$0xff]
    %v207 = vld [vmem:[#allocation5 + $0xc8] sm:$0xff]
    %v208 = vld [vmem:[#allocation5 + $0xd0] sm:$0xff]
    %v209 = vld [vmem:[#allocation5 + $0xd8] sm:$0xff]
    %v210 = vld [vmem:[#allocation5 + $0xe0] sm:$0xff]
    %v211 = vld [vmem:[#allocation5 + $0xe8] sm:$0xff]
    %v212 = vld [vmem:[#allocation5 + $0xf0] sm:$0xff]
    %v213 = vld [vmem:[#allocation5 + $0xf8] sm:$0xff]
    %v214 = vld [vmem:[#allocation5 + $0x100] sm:$0xff]
    %v215 = vld [vmem:[#allocation5 + $0x108] sm:$0xff]
    %v216 = vld [vmem:[#allocation5 + $0x110] sm:$0xff]
    %v217 = vld [vmem:[#allocation5 + $0x118] sm:$0xff]
    %v218 = vld [vmem:[#allocation5 + $0x120] sm:$0xff]
    %v219 = vld [vmem:[#allocation5 + $0x128] sm:$0xff]
    %v220 = vld [vmem:[#allocation5 + $0x130] sm:$0xff]
    %v221 = vld [vmem:[#allocation5 + $0x138] sm:$0xff]
    %v222 = vld [vmem:[#allocation5 + $0x140] sm:$0xff]
    %v223 = vld [vmem:[#allocation5 + $0x148] sm:$0xff]
    %v224 = vld [vmem:[#allocation5 + $0x150] sm:$0xff]
    %v225 = vld [vmem:[#allocation5 + $0x158] sm:$0xff]
    %v226 = vld [vmem:[#allocation5 + $0x160] sm:$0xff]
    %v227 = vld [vmem:[#allocation5 + $0x168] sm:$0xff]
    %v228 = vld [vmem:[#allocation5 + $0x170] sm:$0xff]
    %v229 = vld [vmem:[#allocation5 + $0x178] sm:$0xff]
    %v230 = vld [vmem:[#allocation5 + $0x180] sm:$0xff]
    %v231 = vld [vmem:[#allocation5 + $0x188] sm:$0xff]
    %v232 = vld [vmem:[#allocation5 + $0x190] sm:$0xff]
    %v233 = vld [vmem:[#allocation5 + $0x198] sm:$0xff]
    %v234 = vld [vmem:[#allocation5 + $0x1a0] sm:$0xff]
    %v235 = vld [vmem:[#allocation5 + $0x1a8] sm:$0xff]
    %v236 = vld [vmem:[#allocation5 + $0x1b0] sm:$0xff]
    %v237 = vld [vmem:[#allocation5 + $0x1b8] sm:$0xff]
    %v238 = vld [vmem:[#allocation5 + $0x1c0] sm:$0xff]
    %v239 = vld [vmem:[#allocation5 + $0x1c8] sm:$0xff]
    %v240 = vld [vmem:[#allocation5 + $0x1d0] sm:$0xff]
    %v241 = vld [vmem:[#allocation5 + $0x1d8] sm:$0xff]
    %v242 = vld [vmem:[#allocation5 + $0x1e0] sm:$0xff]
    %v243 = vld [vmem:[#allocation5 + $0x1e8] sm:$0xff]
    %v244 = vld [vmem:[#allocation5 + $0x1f0] sm:$0xff]
    %v245 = vld [vmem:[#allocation5 + $0x1f8] sm:$0xff]
    %v246 = vld [vmem:[#allocation5 + $0x200] sm:$0xff]
    %v247 = vld [vmem:[#allocation5 + $0x208] sm:$0xff]
    %v248 = vld [vmem:[#allocation5 + $0x210] sm:$0xff]
    %v249 = vld [vmem:[#allocation5 + $0x218] sm:$0xff]
    %v250 = vld [vmem:[#allocation5 + $0x220] sm:$0xff]
    %v251 = vld [vmem:[#allocation5 + $0x228] sm:$0xff]
    %v252 = vld [vmem:[#allocation5 + $0x230] sm:$0xff]
    %v253 = vld [vmem:[#allocation5 + $0x238] sm:$0xff]
    %v254 = vld [vmem:[#allocation5 + $0x240] sm:$0xff]
    %v255 = vld [vmem:[#allocation5 + $0x248] sm:$0xff]
    %v256 = vld [vmem:[#allocation5 + $0x250] sm:$0xff]
    %v257 = vld [vmem:[#allocation5 + $0x258] sm:$0xff]
    %v258 = vld [vmem:[#allocation5 + $0x260] sm:$0xff]
    %v259 = vld [vmem:[#allocation5 + $0x268] sm:$0xff]
    %v260 = vld [vmem:[#allocation5 + $0x270] sm:$0xff]
    %v261 = vld [vmem:[#allocation5 + $0x278] sm:$0xff]
    %v262 = vld [vmem:[#allocation5 + $0x280] sm:$0xff]
    %v263 = vld [vmem:[#allocation5 + $0x288] sm:$0xff]
    %v264 = vld [vmem:[#allocation5 + $0x290] sm:$0xff]
    %v265 = vld [vmem:[#allocation5 + $0x298] sm:$0xff]
    %v266 = vld [vmem:[#allocation5 + $0x2a0] sm:$0xff]
    %v267 = vld [vmem:[#allocation5 + $0x2a8] sm:$0xff]
    %v268 = vld [vmem:[#allocation5 + $0x2b0] sm:$0xff]
    %v269 = vld [vmem:[#allocation5 + $0x2b8] sm:$0xff]
    %v270 = vld [vmem:[#allocation5 + $0x2c0] sm:$0xff]
    %v271 = vld [vmem:[#allocation5 + $0x2c8] sm:$0xff]
    %v272 = vld [vmem:[#allocation5 + $0x2d0] sm:$0xff]
    %v273 = vld [vmem:[#allocation5 + $0x2d8] sm:$0xff]
    %v274 = vld [vmem:[#allocation5 + $0x2e0] sm:$0xff]
    %v275 = vld [vmem:[#allocation5 + $0x2e8] sm:$0xff]
    %v276 = vld [vmem:[#allocation5 + $0x2f0] sm:$0xff]
    %v277 = vld [vmem:[#allocation5 + $0x2f8] sm:$0xff]
    %v278 = vld [vmem:[#allocation5 + $0x300] sm:$0xff]
    %v279 = vld [vmem:[#allocation5 + $0x308] sm:$0xff]
    %v280 = vld [vmem:[#allocation5 + $0x310] sm:$0xff]
    %v281 = vld [vmem:[#allocation5 + $0x318] sm:$0xff]
    %v282 = vld [vmem:[#allocation5 + $0x320] sm:$0xff]
    %v283 = vld [vmem:[#allocation5 + $0x328] sm:$0xff]
    %v284 = vld [vmem:[#allocation5 + $0x330] sm:$0xff]
    %v285 = vld [vmem:[#allocation5 + $0x338] sm:$0xff]
    %v286 = vld [vmem:[#allocation5 + $0x340] sm:$0xff]
    %v287 = vld [vmem:[#allocation5 + $0x348] sm:$0xff]
    %v288 = vld [vmem:[#allocation5 + $0x350] sm:$0xff]
    %v289 = vld [vmem:[#allocation5 + $0x358] sm:$0xff]
    %v290 = vld [vmem:[#allocation5 + $0x360] sm:$0xff]
    %v291 = vld [vmem:[#allocation5 + $0x368] sm:$0xff]
    %v292 = vld [vmem:[#allocation5 + $0x370] sm:$0xff]
    %v293 = vld [vmem:[#allocation5 + $0x378] sm:$0xff]
    %v294 = vld [vmem:[#allocation5 + $0x380] sm:$0xff]
    %v295 = vld [vmem:[#allocation5 + $0x388] sm:$0xff]
    %v296 = vld [vmem:[#allocation5 + $0x390] sm:$0xff]
    %v297 = vld [vmem:[#allocation5 + $0x398] sm:$0xff]
    %v298 = vld [vmem:[#allocation5 + $0x3a0] sm:$0xff]
    %v299 = vld [vmem:[#allocation5 + $0x3a8] sm:$0xff]
    %v300 = vld [vmem:[#allocation5 + $0x3b0] sm:$0xff]
    %v301 = vld [vmem:[#allocation5 + $0x3b8] sm:$0xff]
    %v302 = vld [vmem:[#allocation5 + $0x3c0] sm:$0xff]
    %v303 = vld [vmem:[#allocation5 + $0x3c8] sm:$0xff]
    %v304 = vld [vmem:[#allocation5 + $0x3d0] sm:$0xff]
    %v305 = vld [vmem:[#allocation5 + $0x3d8] sm:$0xff]
    %v306 = vld [vmem:[#allocation5 + $0x3e0] sm:$0xff]
    %v307 = vld [vmem:[#allocation5 + $0x3e8] sm:$0xff]
    %v308 = vld [vmem:[#allocation5 + $0x3f0] sm:$0xff]
    %v309 = vld [vmem:[#allocation5 + $0x3f8] sm:$0xff]
    %310 = vmatprep.subr.mxu0 %v213
    %311 = vmatpush1.msra.mxu0 %v212
    %312 = vmatprep.subr.mxu0 %v211
    %313 = vmatpush1.msra.mxu0 %v210
    %314 = vmatprep.subr.mxu0 %v209
    %315 = vmatpush1.msra.mxu0 %v208
    %316 = vmatprep.subr.mxu0 %v207
    %317 = vmatpush1.msra.mxu0 %v206
    %318 = vmatprep.subr.mxu0 %v205
    %319 = vmatpush1.msra.mxu0 %v204
    %320 = vmatprep.subr.mxu0 %v203
    %321 = vmatpush1.msra.mxu0 %v202
    %322 = vmatprep.subr.mxu0 %v201
    %323 = vmatpush1.msra.mxu0 %v200
    %324 = vmatprep.subr.mxu0 %v199
    %325 = vmatpush1.msra.mxu0 %v198
    %326 = vmatprep.subr.mxu0 %v197
    %327 = vmatpush1.msra.mxu0 %v196
    %328 = vmatprep.subr.mxu0 %v195
    %329 = vmatpush1.msra.mxu0 %v194
    %330 = vmatprep.subr.mxu0 %v193
    %331 = vmatpush1.msra.mxu0 %v192
    %332 = vmatprep.subr.mxu0 %v191
    %333 = vmatpush1.msra.mxu0 %v190
    %334 = vmatprep.subr.mxu0 %v189
    %335 = vmatpush1.msra.mxu0 %v188
    %336 = vmatprep.subr.mxu0 %v187
    %337 = vmatpush1.msra.mxu0 %v186
    %338 = vmatprep.subr.mxu0 %v185
    %339 = vmatpush1.msra.mxu0 %v184
    %340 = vmatprep.subr.mxu0 %v183
    %341 = vmatpush1.msra.mxu0 %v182
    %342 = vmatprep.subr.mxu0 %v245
    %343 = vmatpush2.msra.mxu0 %v244
    %344 = vmatprep.subr.mxu0 %v243
    %345 = vmatpush2.msra.mxu0 %v242
    %346 = vmatprep.subr.mxu0 %v241
    %347 = vmatpush2.msra.mxu0 %v240
    %348 = vmatprep.subr.mxu0 %v239
    %349 = vmatpush2.msra.mxu0 %v238
    %350 = vmatprep.subr.mxu0 %v237
    %351 = vmatpush2.msra.mxu0 %v236
    %352 = vmatprep.subr.mxu0 %v235
    %353 = vmatpush2.msra.mxu0 %v234
    %354 = vmatprep.subr.mxu0 %v233
    %355 = vmatpush2.msra.mxu0 %v232
    %356 = vmatprep.subr.mxu0 %v231
    %357 = vmatpush2.msra.mxu0 %v230
    %358 = vmatprep.subr.mxu0 %v229
    %359 = vmatpush2.msra.mxu0 %v228
    %360 = vmatprep.subr.mxu0 %v227
    %361 = vmatpush2.msra.mxu0 %v226
    %362 = vmatprep.subr.mxu0 %v225
    %363 = vmatpush2.msra.mxu0 %v224
    %364 = vmatprep.subr.mxu0 %v223
    %365 = vmatpush2.msra.mxu0 %v222
    %366 = vmatprep.subr.mxu0 %v221
    %367 = vmatpush2.msra.mxu0 %v220
    %368 = vmatprep.subr.mxu0 %v219
    %369 = vmatpush2.msra.mxu0 %v218
    %370 = vmatprep.subr.mxu0 %v217
    %371 = vmatpush2.msra.mxu0 %v216
    %372 = vmatprep.subr.mxu0 %v215
    %373 = vmatpush2.msra.mxu0 %v214
    %374 = vmatprep.mubr.f32.mxu0 %v147
    %375 = vmatmul.mubr.f32.gmra.mxu0 %v146
    %v376 = vpop.f32.mrf.mxu0
    %v377 = vadd.f32 0.0, %v376
    %v378 = vpop.f32.mrf.mxu0
    %v379 = vadd.f32 0.0, %v378
    %380 = vmatprep.mubr.f32.mxu0 %v151
    %381 = vmatmul.mubr.f32.gmra.mxu0 %v150
    %v382 = vpop.f32.mrf.mxu0
    %v383 = vadd.f32 0.0, %v382
    %v384 = vpop.f32.mrf.mxu0
    %v385 = vadd.f32 0.0, %v384
    %386 = vmatprep.mubr.f32.mxu0 %v155
    %387 = vmatmul.mubr.f32.gmra.mxu0 %v154
    %v388 = vpop.f32.mrf.mxu0
    %v389 = vadd.f32 0.0, %v388
    %v390 = vpop.f32.mrf.mxu0
    %v391 = vadd.f32 0.0, %v390
    %392 = vmatprep.mubr.f32.mxu0 %v159
    %393 = vmatmul.mubr.f32.gmra.mxu0 %v158
    %v394 = vpop.f32.mrf.mxu0
    %v395 = vadd.f32 0.0, %v394
    %v396 = vpop.f32.mrf.mxu0
    %v397 = vadd.f32 0.0, %v396
    %398 = vmatprep.mubr.f32.mxu0 %v163
    %399 = vmatmul.mubr.f32.gmra.mxu0 %v162
    %v400 = vpop.f32.mrf.mxu0
    %v401 = vadd.f32 0.0, %v400
    %v402 = vpop.f32.mrf.mxu0
    %v403 = vadd.f32 0.0, %v402
    %404 = vmatprep.mubr.f32.mxu0 %v167
    %405 = vmatmul.mubr.f32.gmra.mxu0 %v166
    %v406 = vpop.f32.mrf.mxu0
    %v407 = vadd.f32 0.0, %v406
    %v408 = vpop.f32.mrf.mxu0
    %v409 = vadd.f32 0.0, %v408
    %410 = vmatprep.mubr.f32.mxu0 %v171
    %411 = vmatmul.mubr.f32.gmra.mxu0 %v170
    %v412 = vpop.f32.mrf.mxu0
    %v413 = vadd.f32 0.0, %v412
    %v414 = vpop.f32.mrf.mxu0
    %v415 = vadd.f32 0.0, %v414
    %416 = vmatprep.mubr.f32.mxu0 %v175
    %417 = vmatmul.mubr.f32.gmra.mxu0 %v174
    %v418 = vpop.f32.mrf.mxu0
    %v419 = vadd.f32 0.0, %v418
    %v420 = vpop.f32.mrf.mxu0
    %v421 = vadd.f32 0.0, %v420
    %422 = vmatprep.mubr.f32.mxu0 %v179
    %423 = vmatmul.mubr.f32.gmra.mxu0 %v178
    %v424 = vpop.f32.mrf.mxu0
    %v425 = vadd.f32 0.0, %v424
    %v426 = vpop.f32.mrf.mxu0
    %v427 = vadd.f32 0.0, %v426
    %428 = vdwg.mxu0
    %429 = vmatprep.subr.mxu0 %v277
    %430 = vmatpush1.msra.mxu0 %v276
    %431 = vmatprep.subr.mxu0 %v275
    %432 = vmatpush1.msra.mxu0 %v274
    %433 = vmatprep.subr.mxu0 %v273
    %434 = vmatpush1.msra.mxu0 %v272
    %435 = vmatprep.subr.mxu0 %v271
    %436 = vmatpush1.msra.mxu0 %v270
    %437 = vmatprep.subr.mxu0 %v269
    %438 = vmatpush1.msra.mxu0 %v268
    %439 = vmatprep.subr.mxu0 %v267
    %440 = vmatpush1.msra.mxu0 %v266
    %441 = vmatprep.subr.mxu0 %v265
    %442 = vmatpush1.msra.mxu0 %v264
    %443 = vmatprep.subr.mxu0 %v263
    %444 = vmatpush1.msra.mxu0 %v262
    %445 = vmatprep.subr.mxu0 %v261
    %446 = vmatpush1.msra.mxu0 %v260
    %447 = vmatprep.subr.mxu0 %v259
    %448 = vmatpush1.msra.mxu0 %v258
    %449 = vmatprep.subr.mxu0 %v257
    %450 = vmatpush1.msra.mxu0 %v256
    %451 = vmatprep.subr.mxu0 %v255
    %452 = vmatpush1.msra.mxu0 %v254
    %453 = vmatprep.subr.mxu0 %v253
    %454 = vmatpush1.msra.mxu0 %v252
    %455 = vmatprep.subr.mxu0 %v251
    %456 = vmatpush1.msra.mxu0 %v250
    %457 = vmatprep.subr.mxu0 %v249
    %458 = vmatpush1.msra.mxu0 %v248
    %459 = vmatprep.subr.mxu0 %v247
    %460 = vmatpush1.msra.mxu0 %v246
    %461 = vmatprep.subr.mxu0 %v309
    %462 = vmatpush2.msra.mxu0 %v308
    %463 = vmatprep.subr.mxu0 %v307
    %464 = vmatpush2.msra.mxu0 %v306
    %465 = vmatprep.subr.mxu0 %v305
    %466 = vmatpush2.msra.mxu0 %v304
    %467 = vmatprep.subr.mxu0 %v303
    %468 = vmatpush2.msra.mxu0 %v302
    %469 = vmatprep.subr.mxu0 %v301
    %470 = vmatpush2.msra.mxu0 %v300
    %471 = vmatprep.subr.mxu0 %v299
    %472 = vmatpush2.msra.mxu0 %v298
    %473 = vmatprep.subr.mxu0 %v297
    %474 = vmatpush2.msra.mxu0 %v296
    %475 = vmatprep.subr.mxu0 %v295
    %476 = vmatpush2.msra.mxu0 %v294
    %477 = vmatprep.subr.mxu0 %v293
    %478 = vmatpush2.msra.mxu0 %v292
    %479 = vmatprep.subr.mxu0 %v291
    %480 = vmatpush2.msra.mxu0 %v290
    %481 = vmatprep.subr.mxu0 %v289
    %482 = vmatpush2.msra.mxu0 %v288
    %483 = vmatprep.subr.mxu0 %v287
    %484 = vmatpush2.msra.mxu0 %v286
    %485 = vmatprep.subr.mxu0 %v285
    %486 = vmatpush2.msra.mxu0 %v284
    %487 = vmatprep.subr.mxu0 %v283
    %488 = vmatpush2.msra.mxu0 %v282
    %489 = vmatprep.subr.mxu0 %v281
    %490 = vmatpush2.msra.mxu0 %v280
    %491 = vmatprep.subr.mxu0 %v279
    %492 = vmatpush2.msra.mxu0 %v278
    %493 = vmatprep.mubr.f32.mxu0 %v149
    %494 = vmatmul.mubr.f32.gmra.mxu0 %v148
    %v495 = vpop.f32.mrf.mxu0
    %v496 = vadd.f32 %v377, %v495
    %v497 = vpop.f32.mrf.mxu0
    %v498 = vadd.f32 %v379, %v497
    %499 = vmatprep.mubr.f32.mxu0 %v153
    %500 = vmatmul.mubr.f32.gmra.mxu0 %v152
    %v501 = vpop.f32.mrf.mxu0
    %v502 = vadd.f32 %v383, %v501
    %v503 = vpop.f32.mrf.mxu0
    %v504 = vadd.f32 %v385, %v503
    %505 = vmatprep.mubr.f32.mxu0 %v157
    %506 = vmatmul.mubr.f32.gmra.mxu0 %v156
    %v507 = vpop.f32.mrf.mxu0
    %v508 = vadd.f32 %v389, %v507
    %v509 = vpop.f32.mrf.mxu0
    %v510 = vadd.f32 %v391, %v509
    %511 = vmatprep.mubr.f32.mxu0 %v161
    %512 = vmatmul.mubr.f32.gmra.mxu0 %v160
    %v513 = vpop.f32.mrf.mxu0
    %v514 = vadd.f32 %v395, %v513
    %v515 = vpop.f32.mrf.mxu0
    %v516 = vadd.f32 %v397, %v515
    %517 = vmatprep.mubr.f32.mxu0 %v165
    %518 = vmatmul.mubr.f32.gmra.mxu0 %v164
    %v519 = vpop.f32.mrf.mxu0
    %v520 = vadd.f32 %v401, %v519
    %v521 = vpop.f32.mrf.mxu0
    %v522 = vadd.f32 %v403, %v521
    %523 = vmatprep.mubr.f32.mxu0 %v169
    %524 = vmatmul.mubr.f32.gmra.mxu0 %v168
    %v525 = vpop.f32.mrf.mxu0
    %v526 = vadd.f32 %v407, %v525
    %v527 = vpop.f32.mrf.mxu0
    %v528 = vadd.f32 %v409, %v527
    %529 = vmatprep.mubr.f32.mxu0 %v173
    %530 = vmatmul.mubr.f32.gmra.mxu0 %v172
    %v531 = vpop.f32.mrf.mxu0
    %v532 = vadd.f32 %v413, %v531
    %v533 = vpop.f32.mrf.mxu0
    %v534 = vadd.f32 %v415, %v533
    %535 = vmatprep.mubr.f32.mxu0 %v177
    %536 = vmatmul.mubr.f32.gmra.mxu0 %v176
    %v537 = vpop.f32.mrf.mxu0
    %v538 = vadd.f32 %v419, %v537
    %v539 = vpop.f32.mrf.mxu0
    %v540 = vadd.f32 %v421, %v539
    %541 = vmatprep.mubr.f32.mxu0 %v181
    %542 = vmatmul.mubr.f32.gmra.mxu0 %v180
    %v543 = vpop.f32.mrf.mxu0
    %v544 = vadd.f32 %v425, %v543
    %v545 = vpop.f32.mrf.mxu0
    %v546 = vadd.f32 %v427, %v545
    %547 = vdwg.mxu0
    %v548 = vld [vmem:[#allocation7] sm:$0xff]
    %v549 = vld [vmem:[#allocation7 + $0x8] sm:$0xff]
    %v550 = vld [vmem:[#allocation7 + $0x10] sm:$0xff]
    %v551 = vld [vmem:[#allocation7 + $0x18] sm:$0xff]
    %v552 = vld [vmem:[#allocation7 + $0x20] sm:$0xff]
    %v553 = vld [vmem:[#allocation7 + $0x28] sm:$0xff]
    %v554 = vld [vmem:[#allocation7 + $0x30] sm:$0xff]
    %v555 = vld [vmem:[#allocation7 + $0x38] sm:$0xff]
    %v556 = vld [vmem:[#allocation7 + $0x40] sm:$0xff]
    %v557 = vld [vmem:[#allocation7 + $0x48] sm:$0xff]
    %v558 = vld [vmem:[#allocation7 + $0x50] sm:$0xff]
    %v559 = vld [vmem:[#allocation7 + $0x58] sm:$0xff]
    %v560 = vld [vmem:[#allocation7 + $0x60] sm:$0xff]
    %v561 = vld [vmem:[#allocation7 + $0x68] sm:$0xff]
    %v562 = vld [vmem:[#allocation7 + $0x70] sm:$0xff]
    %v563 = vld [vmem:[#allocation7 + $0x78] sm:$0xff]
    %v564 = vld [vmem:[#allocation7 + $0x80] sm:$0xff]
    %v565 = vld [vmem:[#allocation7 + $0x88] sm:$0xff]
    %v566 = vld [vmem:[#allocation7 + $0x90] sm:$0xff]
    %v567 = vld [vmem:[#allocation7 + $0x98] sm:$0xff]
    %v568 = vld [vmem:[#allocation7 + $0xa0] sm:$0xff]
    %v569 = vld [vmem:[#allocation7 + $0xa8] sm:$0xff]
    %v570 = vld [vmem:[#allocation7 + $0xb0] sm:$0xff]
    %v571 = vld [vmem:[#allocation7 + $0xb8] sm:$0xff]
    %v572 = vld [vmem:[#allocation7 + $0xc0] sm:$0xff]
    %v573 = vld [vmem:[#allocation7 + $0xc8] sm:$0xff]
    %v574 = vld [vmem:[#allocation7 + $0xd0] sm:$0xff]
    %v575 = vld [vmem:[#allocation7 + $0xd8] sm:$0xff]
    %v576 = vld [vmem:[#allocation7 + $0xe0] sm:$0xff]
    %v577 = vld [vmem:[#allocation7 + $0xe8] sm:$0xff]
    %v578 = vld [vmem:[#allocation7 + $0xf0] sm:$0xff]
    %v579 = vld [vmem:[#allocation7 + $0xf8] sm:$0xff]
    %v580 = vld [vmem:[#allocation7 + $0x100] sm:$0xff]
    %v581 = vld [vmem:[#allocation7 + $0x108] sm:$0xff]
    %v582 = vld [vmem:[#allocation7 + $0x110] sm:$0xff]
    %v583 = vld [vmem:[#allocation7 + $0x118] sm:$0xff]
    %v584 = vld [vmem:[#allocation7 + $0x120] sm:$0xff]
    %v585 = vld [vmem:[#allocation7 + $0x128] sm:$0xff]
    %v586 = vld [vmem:[#allocation7 + $0x130] sm:$0xff]
    %v587 = vld [vmem:[#allocation7 + $0x138] sm:$0xff]
    %v588 = vld [vmem:[#allocation7 + $0x140] sm:$0xff]
    %v589 = vld [vmem:[#allocation7 + $0x148] sm:$0xff]
    %v590 = vld [vmem:[#allocation7 + $0x150] sm:$0xff]
    %v591 = vld [vmem:[#allocation7 + $0x158] sm:$0xff]
    %v592 = vld [vmem:[#allocation7 + $0x160] sm:$0xff]
    %v593 = vld [vmem:[#allocation7 + $0x168] sm:$0xff]
    %v594 = vld [vmem:[#allocation7 + $0x170] sm:$0xff]
    %v595 = vld [vmem:[#allocation7 + $0x178] sm:$0xff]
    %v596 = vld [vmem:[#allocation7 + $0x180] sm:$0xff]
    %v597 = vld [vmem:[#allocation7 + $0x188] sm:$0xff]
    %v598 = vld [vmem:[#allocation7 + $0x190] sm:$0xff]
    %v599 = vld [vmem:[#allocation7 + $0x198] sm:$0xff]
    %v600 = vld [vmem:[#allocation7 + $0x1a0] sm:$0xff]
    %v601 = vld [vmem:[#allocation7 + $0x1a8] sm:$0xff]
    %v602 = vld [vmem:[#allocation7 + $0x1b0] sm:$0xff]
    %v603 = vld [vmem:[#allocation7 + $0x1b8] sm:$0xff]
    %v604 = vld [vmem:[#allocation7 + $0x1c0] sm:$0xff]
    %v605 = vld [vmem:[#allocation7 + $0x1c8] sm:$0xff]
    %v606 = vld [vmem:[#allocation7 + $0x1d0] sm:$0xff]
    %v607 = vld [vmem:[#allocation7 + $0x1d8] sm:$0xff]
    %v608 = vld [vmem:[#allocation7 + $0x1e0] sm:$0xff]
    %v609 = vld [vmem:[#allocation7 + $0x1e8] sm:$0xff]
    %v610 = vld [vmem:[#allocation7 + $0x1f0] sm:$0xff]
    %v611 = vld [vmem:[#allocation7 + $0x1f8] sm:$0xff]
    %v612 = vld [vmem:[#allocation7 + $0x200] sm:$0xff]
    %v613 = vld [vmem:[#allocation7 + $0x208] sm:$0xff]
    %v614 = vld [vmem:[#allocation7 + $0x210] sm:$0xff]
    %v615 = vld [vmem:[#allocation7 + $0x218] sm:$0xff]
    %v616 = vld [vmem:[#allocation7 + $0x220] sm:$0xff]
    %v617 = vld [vmem:[#allocation7 + $0x228] sm:$0xff]
    %v618 = vld [vmem:[#allocation7 + $0x230] sm:$0xff]
    %v619 = vld [vmem:[#allocation7 + $0x238] sm:$0xff]
    %v620 = vld [vmem:[#allocation7 + $0x240] sm:$0xff]
    %v621 = vld [vmem:[#allocation7 + $0x248] sm:$0xff]
    %v622 = vld [vmem:[#allocation7 + $0x250] sm:$0xff]
    %v623 = vld [vmem:[#allocation7 + $0x258] sm:$0xff]
    %v624 = vld [vmem:[#allocation7 + $0x260] sm:$0xff]
    %v625 = vld [vmem:[#allocation7 + $0x268] sm:$0xff]
    %v626 = vld [vmem:[#allocation7 + $0x270] sm:$0xff]
    %v627 = vld [vmem:[#allocation7 + $0x278] sm:$0xff]
    %v628 = vld [vmem:[#allocation7 + $0x280] sm:$0xff]
    %v629 = vld [vmem:[#allocation7 + $0x288] sm:$0xff]
    %v630 = vld [vmem:[#allocation7 + $0x290] sm:$0xff]
    %v631 = vld [vmem:[#allocation7 + $0x298] sm:$0xff]
    %v632 = vld [vmem:[#allocation7 + $0x2a0] sm:$0xff]
    %v633 = vld [vmem:[#allocation7 + $0x2a8] sm:$0xff]
    %v634 = vld [vmem:[#allocation7 + $0x2b0] sm:$0xff]
    %v635 = vld [vmem:[#allocation7 + $0x2b8] sm:$0xff]
    %v636 = vld [vmem:[#allocation7 + $0x2c0] sm:$0xff]
    %v637 = vld [vmem:[#allocation7 + $0x2c8] sm:$0xff]
    %v638 = vld [vmem:[#allocation7 + $0x2d0] sm:$0xff]
    %v639 = vld [vmem:[#allocation7 + $0x2d8] sm:$0xff]
    %v640 = vld [vmem:[#allocation7 + $0x2e0] sm:$0xff]
    %v641 = vld [vmem:[#allocation7 + $0x2e8] sm:$0xff]
    %v642 = vld [vmem:[#allocation7 + $0x2f0] sm:$0xff]
    %v643 = vld [vmem:[#allocation7 + $0x2f8] sm:$0xff]
    %v644 = vld [vmem:[#allocation7 + $0x300] sm:$0xff]
    %v645 = vld [vmem:[#allocation7 + $0x308] sm:$0xff]
    %v646 = vld [vmem:[#allocation7 + $0x310] sm:$0xff]
    %v647 = vld [vmem:[#allocation7 + $0x318] sm:$0xff]
    %v648 = vld [vmem:[#allocation7 + $0x320] sm:$0xff]
    %v649 = vld [vmem:[#allocation7 + $0x328] sm:$0xff]
    %v650 = vld [vmem:[#allocation7 + $0x330] sm:$0xff]
    %v651 = vld [vmem:[#allocation7 + $0x338] sm:$0xff]
    %v652 = vld [vmem:[#allocation7 + $0x340] sm:$0xff]
    %v653 = vld [vmem:[#allocation7 + $0x348] sm:$0xff]
    %v654 = vld [vmem:[#allocation7 + $0x350] sm:$0xff]
    %v655 = vld [vmem:[#allocation7 + $0x358] sm:$0xff]
    %v656 = vld [vmem:[#allocation7 + $0x360] sm:$0xff]
    %v657 = vld [vmem:[#allocation7 + $0x368] sm:$0xff]
    %v658 = vld [vmem:[#allocation7 + $0x370] sm:$0xff]
    %v659 = vld [vmem:[#allocation7 + $0x378] sm:$0xff]
    %v660 = vld [vmem:[#allocation7 + $0x380] sm:$0xff]
    %v661 = vld [vmem:[#allocation7 + $0x388] sm:$0xff]
    %v662 = vld [vmem:[#allocation7 + $0x390] sm:$0xff]
    %v663 = vld [vmem:[#allocation7 + $0x398] sm:$0xff]
    %v664 = vld [vmem:[#allocation7 + $0x3a0] sm:$0xff]
    %v665 = vld [vmem:[#allocation7 + $0x3a8] sm:$0xff]
    %v666 = vld [vmem:[#allocation7 + $0x3b0] sm:$0xff]
    %v667 = vld [vmem:[#allocation7 + $0x3b8] sm:$0xff]
    %v668 = vld [vmem:[#allocation7 + $0x3c0] sm:$0xff]
    %v669 = vld [vmem:[#allocation7 + $0x3c8] sm:$0xff]
    %v670 = vld [vmem:[#allocation7 + $0x3d0] sm:$0xff]
    %v671 = vld [vmem:[#allocation7 + $0x3d8] sm:$0xff]
    %v672 = vld [vmem:[#allocation7 + $0x3e0] sm:$0xff]
    %v673 = vld [vmem:[#allocation7 + $0x3e8] sm:$0xff]
    %v674 = vld [vmem:[#allocation7 + $0x3f0] sm:$0xff]
    %v675 = vld [vmem:[#allocation7 + $0x3f8] sm:$0xff]
    %676 = vmatprep.subr.mxu0 %v579
    %677 = vmatpush1.msra.mxu0 %v578
    %678 = vmatprep.subr.mxu0 %v577
    %679 = vmatpush1.msra.mxu0 %v576
    %680 = vmatprep.subr.mxu0 %v575
    %681 = vmatpush1.msra.mxu0 %v574
    %682 = vmatprep.subr.mxu0 %v573
    %683 = vmatpush1.msra.mxu0 %v572
    %684 = vmatprep.subr.mxu0 %v571
    %685 = vmatpush1.msra.mxu0 %v570
    %686 = vmatprep.subr.mxu0 %v569
    %687 = vmatpush1.msra.mxu0 %v568
    %688 = vmatprep.subr.mxu0 %v567
    %689 = vmatpush1.msra.mxu0 %v566
    %690 = vmatprep.subr.mxu0 %v565
    %691 = vmatpush1.msra.mxu0 %v564
    %692 = vmatprep.subr.mxu0 %v563
    %693 = vmatpush1.msra.mxu0 %v562
    %694 = vmatprep.subr.mxu0 %v561
    %695 = vmatpush1.msra.mxu0 %v560
    %696 = vmatprep.subr.mxu0 %v559
    %697 = vmatpush1.msra.mxu0 %v558
    %698 = vmatprep.subr.mxu0 %v557
    %699 = vmatpush1.msra.mxu0 %v556
    %700 = vmatprep.subr.mxu0 %v555
    %701 = vmatpush1.msra.mxu0 %v554
    %702 = vmatprep.subr.mxu0 %v553
    %703 = vmatpush1.msra.mxu0 %v552
    %704 = vmatprep.subr.mxu0 %v551
    %705 = vmatpush1.msra.mxu0 %v550
    %706 = vmatprep.subr.mxu0 %v549
    %707 = vmatpush1.msra.mxu0 %v548
    %708 = vmatprep.subr.mxu0 %v611
    %709 = vmatpush2.msra.mxu0 %v610
    %710 = vmatprep.subr.mxu0 %v609
    %711 = vmatpush2.msra.mxu0 %v608
    %712 = vmatprep.subr.mxu0 %v607
    %713 = vmatpush2.msra.mxu0 %v606
    %714 = vmatprep.subr.mxu0 %v605
    %715 = vmatpush2.msra.mxu0 %v604
    %716 = vmatprep.subr.mxu0 %v603
    %717 = vmatpush2.msra.mxu0 %v602
    %718 = vmatprep.subr.mxu0 %v601
    %719 = vmatpush2.msra.mxu0 %v600
    %720 = vmatprep.subr.mxu0 %v599
    %721 = vmatpush2.msra.mxu0 %v598
    %722 = vmatprep.subr.mxu0 %v597
    %723 = vmatpush2.msra.mxu0 %v596
    %724 = vmatprep.subr.mxu0 %v595
    %725 = vmatpush2.msra.mxu0 %v594
    %726 = vmatprep.subr.mxu0 %v593
    %727 = vmatpush2.msra.mxu0 %v592
    %728 = vmatprep.subr.mxu0 %v591
    %729 = vmatpush2.msra.mxu0 %v590
    %730 = vmatprep.subr.mxu0 %v589
    %731 = vmatpush2.msra.mxu0 %v588
    %732 = vmatprep.subr.mxu0 %v587
    %733 = vmatpush2.msra.mxu0 %v586
    %734 = vmatprep.subr.mxu0 %v585
    %735 = vmatpush2.msra.mxu0 %v584
    %736 = vmatprep.subr.mxu0 %v583
    %737 = vmatpush2.msra.mxu0 %v582
    %738 = vmatprep.subr.mxu0 %v581
    %739 = vmatpush2.msra.mxu0 %v580
    %740 = vmatprep.mubr.f32.mxu0 %v147
    %741 = vmatmul.mubr.f32.gmra.mxu0 %v146
    %v742 = vpop.f32.mrf.mxu0
    %v743 = vadd.f32 0.0, %v742
    %v744 = vpop.f32.mrf.mxu0
    %v745 = vadd.f32 0.0, %v744
    %746 = vmatprep.mubr.f32.mxu0 %v151
    %747 = vmatmul.mubr.f32.gmra.mxu0 %v150
    %v748 = vpop.f32.mrf.mxu0
    %v749 = vadd.f32 0.0, %v748
    %v750 = vpop.f32.mrf.mxu0
    %v751 = vadd.f32 0.0, %v750
    %752 = vmatprep.mubr.f32.mxu0 %v155
    %753 = vmatmul.mubr.f32.gmra.mxu0 %v154
    %v754 = vpop.f32.mrf.mxu0
    %v755 = vadd.f32 0.0, %v754
    %v756 = vpop.f32.mrf.mxu0
    %v757 = vadd.f32 0.0, %v756
    %758 = vmatprep.mubr.f32.mxu0 %v159
    %759 = vmatmul.mubr.f32.gmra.mxu0 %v158
    %v760 = vpop.f32.mrf.mxu0
    %v761 = vadd.f32 0.0, %v760
    %v762 = vpop.f32.mrf.mxu0
    %v763 = vadd.f32 0.0, %v762
    %764 = vmatprep.mubr.f32.mxu0 %v163
    %765 = vmatmul.mubr.f32.gmra.mxu0 %v162
    %v766 = vpop.f32.mrf.mxu0
    %v767 = vadd.f32 0.0, %v766
    %v768 = vpop.f32.mrf.mxu0
    %v769 = vadd.f32 0.0, %v768
    %770 = vmatprep.mubr.f32.mxu0 %v167
    %771 = vmatmul.mubr.f32.gmra.mxu0 %v166
    %v772 = vpop.f32.mrf.mxu0
    %v773 = vadd.f32 0.0, %v772
    %v774 = vpop.f32.mrf.mxu0
    %v775 = vadd.f32 0.0, %v774
    %776 = vmatprep.mubr.f32.mxu0 %v171
    %777 = vmatmul.mubr.f32.gmra.mxu0 %v170
    %v778 = vpop.f32.mrf.mxu0
    %v779 = vadd.f32 0.0, %v778
    %v780 = vpop.f32.mrf.mxu0
    %v781 = vadd.f32 0.0, %v780
    %782 = vmatprep.mubr.f32.mxu0 %v175
    %783 = vmatmul.mubr.f32.gmra.mxu0 %v174
    %v784 = vpop.f32.mrf.mxu0
    %v785 = vadd.f32 0.0, %v784
    %v786 = vpop.f32.mrf.mxu0
    %v787 = vadd.f32 0.0, %v786
    %788 = vmatprep.mubr.f32.mxu0 %v179
    %789 = vmatmul.mubr.f32.gmra.mxu0 %v178
    %v790 = vpop.f32.mrf.mxu0
    %v791 = vadd.f32 0.0, %v790
    %v792 = vpop.f32.mrf.mxu0
    %v793 = vadd.f32 0.0, %v792
    %794 = vdwg.mxu0
    %795 = vmatprep.subr.mxu0 %v643
    %796 = vmatpush1.msra.mxu0 %v642
    %797 = vmatprep.subr.mxu0 %v641
    %798 = vmatpush1.msra.mxu0 %v640
    %799 = vmatprep.subr.mxu0 %v639
    %800 = vmatpush1.msra.mxu0 %v638
    %801 = vmatprep.subr.mxu0 %v637
    %802 = vmatpush1.msra.mxu0 %v636
    %803 = vmatprep.subr.mxu0 %v635
    %804 = vmatpush1.msra.mxu0 %v634
    %805 = vmatprep.subr.mxu0 %v633
    %806 = vmatpush1.msra.mxu0 %v632
    %807 = vmatprep.subr.mxu0 %v631
    %808 = vmatpush1.msra.mxu0 %v630
    %809 = vmatprep.subr.mxu0 %v629
    %810 = vmatpush1.msra.mxu0 %v628
    %811 = vmatprep.subr.mxu0 %v627
    %812 = vmatpush1.msra.mxu0 %v626
    %813 = vmatprep.subr.mxu0 %v625
    %814 = vmatpush1.msra.mxu0 %v624
    %815 = vmatprep.subr.mxu0 %v623
    %816 = vmatpush1.msra.mxu0 %v622
    %817 = vmatprep.subr.mxu0 %v621
    %818 = vmatpush1.msra.mxu0 %v620
    %819 = vmatprep.subr.mxu0 %v619
    %820 = vmatpush1.msra.mxu0 %v618
    %821 = vmatprep.subr.mxu0 %v617
    %822 = vmatpush1.msra.mxu0 %v616
    %823 = vmatprep.subr.mxu0 %v615
    %824 = vmatpush1.msra.mxu0 %v614
    %825 = vmatprep.subr.mxu0 %v613
    %826 = vmatpush1.msra.mxu0 %v612
    %827 = vmatprep.subr.mxu0 %v675
    %828 = vmatpush2.msra.mxu0 %v674
    %829 = vmatprep.subr.mxu0 %v673
    %830 = vmatpush2.msra.mxu0 %v672
    %831 = vmatprep.subr.mxu0 %v671
    %832 = vmatpush2.msra.mxu0 %v670
    %833 = vmatprep.subr.mxu0 %v669
    %834 = vmatpush2.msra.mxu0 %v668
    %835 = vmatprep.subr.mxu0 %v667
    %836 = vmatpush2.msra.mxu0 %v666
    %837 = vmatprep.subr.mxu0 %v665
    %838 = vmatpush2.msra.mxu0 %v664
    %839 = vmatprep.subr.mxu0 %v663
    %840 = vmatpush2.msra.mxu0 %v662
    %841 = vmatprep.subr.mxu0 %v661
    %842 = vmatpush2.msra.mxu0 %v660
    %843 = vmatprep.subr.mxu0 %v659
    %844 = vmatpush2.msra.mxu0 %v658
    %845 = vmatprep.subr.mxu0 %v657
    %846 = vmatpush2.msra.mxu0 %v656
    %847 = vmatprep.subr.mxu0 %v655
    %848 = vmatpush2.msra.mxu0 %v654
    %849 = vmatprep.subr.mxu0 %v653
    %850 = vmatpush2.msra.mxu0 %v652
    %851 = vmatprep.subr.mxu0 %v651
    %852 = vmatpush2.msra.mxu0 %v650
    %853 = vmatprep.subr.mxu0 %v649
    %854 = vmatpush2.msra.mxu0 %v648
    %855 = vmatprep.subr.mxu0 %v647
    %856 = vmatpush2.msra.mxu0 %v646
    %857 = vmatprep.subr.mxu0 %v645
    %858 = vmatpush2.msra.mxu0 %v644
    %859 = vmatprep.mubr.f32.mxu0 %v149
    %860 = vmatmul.mubr.f32.gmra.mxu0 %v148
    %v861 = vpop.f32.mrf.mxu0
    %v862 = vadd.f32 %v743, %v861
    %v863 = vpop.f32.mrf.mxu0
    %v864 = vadd.f32 %v745, %v863
    %865 = vmatprep.mubr.f32.mxu0 %v153
    %866 = vmatmul.mubr.f32.gmra.mxu0 %v152
    %v867 = vpop.f32.mrf.mxu0
    %v868 = vadd.f32 %v749, %v867
    %v869 = vpop.f32.mrf.mxu0
    %v870 = vadd.f32 %v751, %v869
    %871 = vmatprep.mubr.f32.mxu0 %v157
    %872 = vmatmul.mubr.f32.gmra.mxu0 %v156
    %v873 = vpop.f32.mrf.mxu0
    %v874 = vadd.f32 %v755, %v873
    %v875 = vpop.f32.mrf.mxu0
    %v876 = vadd.f32 %v757, %v875
    %877 = vmatprep.mubr.f32.mxu0 %v161
    %878 = vmatmul.mubr.f32.gmra.mxu0 %v160
    %v879 = vpop.f32.mrf.mxu0
    %v880 = vadd.f32 %v761, %v879
    %v881 = vpop.f32.mrf.mxu0
    %v882 = vadd.f32 %v763, %v881
    %883 = vmatprep.mubr.f32.mxu0 %v165
    %884 = vmatmul.mubr.f32.gmra.mxu0 %v164
    %v885 = vpop.f32.mrf.mxu0
    %v886 = vadd.f32 %v767, %v885
    %v887 = vpop.f32.mrf.mxu0
    %v888 = vadd.f32 %v769, %v887
    %889 = vmatprep.mubr.f32.mxu0 %v169
    %890 = vmatmul.mubr.f32.gmra.mxu0 %v168
    %v891 = vpop.f32.mrf.mxu0
    %v892 = vadd.f32 %v773, %v891
    %v893 = vpop.f32.mrf.mxu0
    %v894 = vadd.f32 %v775, %v893
    %895 = vmatprep.mubr.f32.mxu0 %v173
    %896 = vmatmul.mubr.f32.gmra.mxu0 %v172
    %v897 = vpop.f32.mrf.mxu0
    %v898 = vadd.f32 %v779, %v897
    %v899 = vpop.f32.mrf.mxu0
    %v900 = vadd.f32 %v781, %v899
    %901 = vmatprep.mubr.f32.mxu0 %v177
    %902 = vmatmul.mubr.f32.gmra.mxu0 %v176
    %v903 = vpop.f32.mrf.mxu0
    %v904 = vadd.f32 %v785, %v903
    %v905 = vpop.f32.mrf.mxu0
    %v906 = vadd.f32 %v787, %v905
    %907 = vmatprep.mubr.f32.mxu0 %v181
    %908 = vmatmul.mubr.f32.gmra.mxu0 %v180
    %v909 = vpop.f32.mrf.mxu0
    %v910 = vadd.f32 %v791, %v909
    %v911 = vpop.f32.mrf.mxu0
    %v912 = vadd.f32 %v793, %v911
    %913 = vdwg.mxu0
    %v914 = vmul.f32 %v496, %v496
    %v915 = vmul.f32 %v498, %v498
    %v916 = vmul.f32 %v502, %v502
    %v917 = vmul.f32 %v504, %v504
    %v918 = vmul.f32 %v508, %v508
    %v919 = vmul.f32 %v510, %v510
    %v920 = vmul.f32 %v514, %v514
    %v921 = vmul.f32 %v516, %v516
    %v922 = vmul.f32 %v520, %v520
    %v923 = vmul.f32 %v522, %v522
    %v924 = vmul.f32 %v526, %v526
    %v925 = vmul.f32 %v528, %v528
    %v926 = vmul.f32 %v532, %v532
    %v927 = vmul.f32 %v534, %v534
    %v928 = vmul.f32 %v538, %v538
    %v929 = vmul.f32 %v540, %v540
    %v930 = vmul.f32 %v544, %v544
    %v931 = vmul.f32 %v546, %v546
    %v932 = vmul.f32 %v862, %v862
    %v933 = vmul.f32 %v864, %v864
    %v934 = vmul.f32 %v868, %v868
    %v935 = vmul.f32 %v870, %v870
    %v936 = vmul.f32 %v874, %v874
    %v937 = vmul.f32 %v876, %v876
    %v938 = vmul.f32 %v880, %v880
    %v939 = vmul.f32 %v882, %v882
    %v940 = vmul.f32 %v886, %v886
    %v941 = vmul.f32 %v888, %v888
    %v942 = vmul.f32 %v892, %v892
    %v943 = vmul.f32 %v894, %v894
    %v944 = vmul.f32 %v898, %v898
    %v945 = vmul.f32 %v900, %v900
    %v946 = vmul.f32 %v904, %v904
    %v947 = vmul.f32 %v906, %v906
    %v948 = vmul.f32 %v910, %v910
    %v949 = vmul.f32 %v912, %v912
    %v950 = vadd.f32 %v914, %v932
    %v951 = vadd.f32 %v915, %v933
    %v952 = vadd.f32 %v916, %v934
    %v953 = vadd.f32 %v917, %v935
    %v954 = vadd.f32 %v918, %v936
    %v955 = vadd.f32 %v919, %v937
    %v956 = vadd.f32 %v920, %v938
    %v957 = vadd.f32 %v921, %v939
    %v958 = vadd.f32 %v922, %v940
    %v959 = vadd.f32 %v923, %v941
    %v960 = vadd.f32 %v924, %v942
    %v961 = vadd.f32 %v925, %v943
    %v962 = vadd.f32 %v926, %v944
    %v963 = vadd.f32 %v927, %v945
    %v964 = vadd.f32 %v928, %v946
    %v965 = vadd.f32 %v929, %v947
    %v966 = vadd.f32 %v930, %v948
    %v967 = vadd.f32 %v931, %v949
    %v968 = vld [vmem:[#allocation8] sm:$0xff]
    %v969 = vld [vmem:[#allocation8 + $0x8] sm:$0xff]
    %v970 = vld [vmem:[#allocation8 + $0x10] sm:$0xff]
    %v971 = vld [vmem:[#allocation8 + $0x18] sm:$0xff]
    %v972 = vld [vmem:[#allocation8 + $0x20] sm:$0xff]
    %v973 = vld [vmem:[#allocation8 + $0x28] sm:$0xff]
    %v974 = vld [vmem:[#allocation8 + $0x30] sm:$0xff]
    %v975 = vld [vmem:[#allocation8 + $0x38] sm:$0xff]
    %v976 = vld [vmem:[#allocation8 + $0x40] sm:$0xff]
    %v977 = vld [vmem:[#allocation8 + $0x48] sm:$0xff]
    %v978 = vld [vmem:[#allocation8 + $0x50] sm:$0xff]
    %v979 = vld [vmem:[#allocation8 + $0x58] sm:$0xff]
    %v980 = vld [vmem:[#allocation8 + $0x60] sm:$0xff]
    %v981 = vld [vmem:[#allocation8 + $0x68] sm:$0xff]
    %v982 = vld [vmem:[#allocation8 + $0x70] sm:$0xff]
    %v983 = vld [vmem:[#allocation8 + $0x78] sm:$0xff]
    %v984 = vld [vmem:[#allocation8 + $0x80] sm:$0xff]
    %v985 = vld [vmem:[#allocation8 + $0x88] sm:$0xff]
    %v986 = vld [vmem:[#allocation8 + $0x90] sm:$0xff]
    %v987 = vld [vmem:[#allocation8 + $0x98] sm:$0xff]
    %v988 = vld [vmem:[#allocation8 + $0xa0] sm:$0xff]
    %v989 = vld [vmem:[#allocation8 + $0xa8] sm:$0xff]
    %v990 = vld [vmem:[#allocation8 + $0xb0] sm:$0xff]
    %v991 = vld [vmem:[#allocation8 + $0xb8] sm:$0xff]
    %v992 = vld [vmem:[#allocation8 + $0xc0] sm:$0xff]
    %v993 = vld [vmem:[#allocation8 + $0xc8] sm:$0xff]
    %v994 = vld [vmem:[#allocation8 + $0xd0] sm:$0xff]
    %v995 = vld [vmem:[#allocation8 + $0xd8] sm:$0xff]
    %v996 = vld [vmem:[#allocation8 + $0xe0] sm:$0xff]
    %v997 = vld [vmem:[#allocation8 + $0xe8] sm:$0xff]
    %v998 = vld [vmem:[#allocation8 + $0xf0] sm:$0xff]
    %v999 = vld [vmem:[#allocation8 + $0xf8] sm:$0xff]
    %1000 = vmatprep.subr.mxu0 0.0
    %1001 = vmatpush1.msra.mxu0 %v983
    %1002 = vmatprep.subr.mxu0 0.0
    %1003 = vmatpush1.msra.mxu0 %v982
    %1004 = vmatprep.subr.mxu0 0.0
    %1005 = vmatpush1.msra.mxu0 %v981
    %1006 = vmatprep.subr.mxu0 0.0
    %1007 = vmatpush1.msra.mxu0 %v980
    %1008 = vmatprep.subr.mxu0 0.0
    %1009 = vmatpush1.msra.mxu0 %v979
    %1010 = vmatprep.subr.mxu0 0.0
    %1011 = vmatpush1.msra.mxu0 %v978
    %1012 = vmatprep.subr.mxu0 0.0
    %1013 = vmatpush1.msra.mxu0 %v977
    %1014 = vmatprep.subr.mxu0 0.0
    %1015 = vmatpush1.msra.mxu0 %v976
    %1016 = vmatprep.subr.mxu0 0.0
    %1017 = vmatpush1.msra.mxu0 %v975
    %1018 = vmatprep.subr.mxu0 0.0
    %1019 = vmatpush1.msra.mxu0 %v974
    %1020 = vmatprep.subr.mxu0 0.0
    %1021 = vmatpush1.msra.mxu0 %v973
    %1022 = vmatprep.subr.mxu0 0.0
    %1023 = vmatpush1.msra.mxu0 %v972
    %1024 = vmatprep.subr.mxu0 0.0
    %1025 = vmatpush1.msra.mxu0 %v971
    %1026 = vmatprep.subr.mxu0 0.0
    %1027 = vmatpush1.msra.mxu0 %v970
    %1028 = vmatprep.subr.mxu0 0.0
    %1029 = vmatpush1.msra.mxu0 %v969
    %1030 = vmatprep.subr.mxu0 0.0
    %1031 = vmatpush1.msra.mxu0 %v968
    %1032 = vmatprep.subr.mxu0 0.0
    %1033 = vmatpush2.msra.mxu0 %v999
    %1034 = vmatprep.subr.mxu0 0.0
    %1035 = vmatpush2.msra.mxu0 %v998
    %1036 = vmatprep.subr.mxu0 0.0
    %1037 = vmatpush2.msra.mxu0 %v997
    %1038 = vmatprep.subr.mxu0 0.0
    %1039 = vmatpush2.msra.mxu0 %v996
    %1040 = vmatprep.subr.mxu0 0.0
    %1041 = vmatpush2.msra.mxu0 %v995
    %1042 = vmatprep.subr.mxu0 0.0
    %1043 = vmatpush2.msra.mxu0 %v994
    %1044 = vmatprep.subr.mxu0 0.0
    %1045 = vmatpush2.msra.mxu0 %v993
    %1046 = vmatprep.subr.mxu0 0.0
    %1047 = vmatpush2.msra.mxu0 %v992
    %1048 = vmatprep.subr.mxu0 0.0
    %1049 = vmatpush2.msra.mxu0 %v991
    %1050 = vmatprep.subr.mxu0 0.0
    %1051 = vmatpush2.msra.mxu0 %v990
    %1052 = vmatprep.subr.mxu0 0.0
    %1053 = vmatpush2.msra.mxu0 %v989
    %1054 = vmatprep.subr.mxu0 0.0
    %1055 = vmatpush2.msra.mxu0 %v988
    %1056 = vmatprep.subr.mxu0 0.0
    %1057 = vmatpush2.msra.mxu0 %v987
    %1058 = vmatprep.subr.mxu0 0.0
    %1059 = vmatpush2.msra.mxu0 %v986
    %1060 = vmatprep.subr.mxu0 0.0
    %1061 = vmatpush2.msra.mxu0 %v985
    %1062 = vmatprep.subr.mxu0 0.0
    %1063 = vmatpush2.msra.mxu0 %v984
    %1064 = vmatprep.mubr.f32.mxu0 %v951
    %1065 = vmatmul.mubr.f32.gmra.mxu0 %v950
    %v1066 = vpop.f32.mrf.mxu0
    %v1067 = vadd.f32 1e-06, %v1066
    %v1068 = vpop.f32.mrf.mxu0
    %1069 = vmatprep.mubr.f32.mxu0 %v953
    %1070 = vmatmul.mubr.f32.gmra.mxu0 %v952
    %v1071 = vpop.f32.mrf.mxu0
    %v1072 = vadd.f32 1e-06, %v1071
    %v1073 = vpop.f32.mrf.mxu0
    %1074 = vmatprep.mubr.f32.mxu0 %v955
    %1075 = vmatmul.mubr.f32.gmra.mxu0 %v954
    %v1076 = vpop.f32.mrf.mxu0
    %v1077 = vadd.f32 1e-06, %v1076
    %v1078 = vpop.f32.mrf.mxu0
    %1079 = vmatprep.mubr.f32.mxu0 %v957
    %1080 = vmatmul.mubr.f32.gmra.mxu0 %v956
    %v1081 = vpop.f32.mrf.mxu0
    %v1082 = vadd.f32 1e-06, %v1081
    %v1083 = vpop.f32.mrf.mxu0
    %1084 = vmatprep.mubr.f32.mxu0 %v959
    %1085 = vmatmul.mubr.f32.gmra.mxu0 %v958
    %v1086 = vpop.f32.mrf.mxu0
    %v1087 = vadd.f32 1e-06, %v1086
    %v1088 = vpop.f32.mrf.mxu0
    %1089 = vmatprep.mubr.f32.mxu0 %v961
    %1090 = vmatmul.mubr.f32.gmra.mxu0 %v960
    %v1091 = vpop.f32.mrf.mxu0
    %v1092 = vadd.f32 1e-06, %v1091
    %v1093 = vpop.f32.mrf.mxu0
    %1094 = vmatprep.mubr.f32.mxu0 %v963
    %1095 = vmatmul.mubr.f32.gmra.mxu0 %v962
    %v1096 = vpop.f32.mrf.mxu0
    %v1097 = vadd.f32 1e-06, %v1096
    %v1098 = vpop.f32.mrf.mxu0
    %1099 = vmatprep.mubr.f32.mxu0 %v965
    %1100 = vmatmul.mubr.f32.gmra.mxu0 %v964
    %v1101 = vpop.f32.mrf.mxu0
    %v1102 = vadd.f32 1e-06, %v1101
    %v1103 = vpop.f32.mrf.mxu0
    %1104 = vmatprep.mubr.f32.mxu0 %v967
    %1105 = vmatmul.mubr.f32.gmra.mxu0 %v966
    %v1106 = vpop.f32.mrf.mxu0
    %v1107 = vadd.f32 1e-06, %v1106
    %v1108 = vpop.f32.mrf.mxu0
    %1109 = vdwg.mxu0
    %v1110 = vlog2.pop %v1067
    %v1111 = vmul.f32 %v1110, 0.6931472
    %v1112 = vlog2.pop %v1072
    %v1113 = vmul.f32 %v1112, 0.6931472
    %v1114 = vlog2.pop %v1077
    %v1115 = vmul.f32 %v1114, 0.6931472
    %v1116 = vlog2.pop %v1082
    %v1117 = vmul.f32 %v1116, 0.6931472
    %v1118 = vlog2.pop %v1087
    %v1119 = vmul.f32 %v1118, 0.6931472
    %v1120 = vlog2.pop %v1092
    %v1121 = vmul.f32 %v1120, 0.6931472
    %v1122 = vlog2.pop %v1097
    %v1123 = vmul.f32 %v1122, 0.6931472
    %v1124 = vlog2.pop %v1102
    %v1125 = vmul.f32 %v1124, 0.6931472
    %v1126 = vlog2.pop %v1107
    %v1127 = vmul.f32 %v1126, 0.6931472
    %v1128 = vld [vmem:[%s6] sm:$0xff]
    %vm1129 = vcmask 588800
    %v1131 = vsel %vm1129, %v1128, 0
    %1133 = vmatprep.subr.mxu0 0.0
    %1134 = vmatpush1.msra.mxu0 0.0
    %1135 = vmatprep.subr.mxu0 0.0
    %1136 = vmatpush1.msra.mxu0 0.0
    %1137 = vmatprep.subr.mxu0 0.0
    %1138 = vmatpush1.msra.mxu0 0.0
    %1139 = vmatprep.subr.mxu0 0.0
    %1140 = vmatpush1.msra.mxu0 0.0
    %1141 = vmatprep.subr.mxu0 0.0
    %1142 = vmatpush1.msra.mxu0 0.0
    %1143 = vmatprep.subr.mxu0 0.0
    %1144 = vmatpush1.msra.mxu0 0.0
    %1145 = vmatprep.subr.mxu0 0.0
    %1146 = vmatpush1.msra.mxu0 0.0
    %1147 = vmatprep.subr.mxu0 0.0
    %1148 = vmatpush1.msra.mxu0 %v1127
    %1149 = vmatprep.subr.mxu0 0.0
    %1150 = vmatpush1.msra.mxu0 %v1125
    %1151 = vmatprep.subr.mxu0 0.0
    %1152 = vmatpush1.msra.mxu0 %v1123
    %1153 = vmatprep.subr.mxu0 0.0
    %1154 = vmatpush1.msra.mxu0 %v1121
    %1155 = vmatprep.subr.mxu0 0.0
    %1156 = vmatpush1.msra.mxu0 %v1119
    %1157 = vmatprep.subr.mxu0 0.0
    %1158 = vmatpush1.msra.mxu0 %v1117
    %1159 = vmatprep.subr.mxu0 0.0
    %1160 = vmatpush1.msra.mxu0 %v1115
    %1161 = vmatprep.subr.mxu0 0.0
    %1162 = vmatpush1.msra.mxu0 %v1113
    %1163 = vmatprep.subr.mxu0 0.0
    %1164 = vmatpush1.msra.mxu0 %v1111
    %1165 = vmatprep.subr.mxu0 0.0
    %1166 = vmatpush2.msra.mxu0 0.0
    %1167 = vmatprep.subr.mxu0 0.0
    %1168 = vmatpush2.msra.mxu0 0.0
    %1169 = vmatprep.subr.mxu0 0.0
    %1170 = vmatpush2.msra.mxu0 0.0
    %1171 = vmatprep.subr.mxu0 0.0
    %1172 = vmatpush2.msra.mxu0 0.0
    %1173 = vmatprep.subr.mxu0 0.0
    %1174 = vmatpush2.msra.mxu0 0.0
    %1175 = vmatprep.subr.mxu0 0.0
    %1176 = vmatpush2.msra.mxu0 0.0
    %1177 = vmatprep.subr.mxu0 0.0
    %1178 = vmatpush2.msra.mxu0 0.0
    %1179 = vmatprep.subr.mxu0 0.0
    %1180 = vmatpush2.msra.mxu0 0.0
    %1181 = vmatprep.subr.mxu0 0.0
    %1182 = vmatpush2.msra.mxu0 0.0
    %1183 = vmatprep.subr.mxu0 0.0
    %1184 = vmatpush2.msra.mxu0 0.0
    %1185 = vmatprep.subr.mxu0 0.0
    %1186 = vmatpush2.msra.mxu0 0.0
    %1187 = vmatprep.subr.mxu0 0.0
    %1188 = vmatpush2.msra.mxu0 0.0
    %1189 = vmatprep.subr.mxu0 0.0
    %1190 = vmatpush2.msra.mxu0 0.0
    %1191 = vmatprep.subr.mxu0 0.0
    %1192 = vmatpush2.msra.mxu0 0.0
    %1193 = vmatprep.subr.mxu0 0.0
    %1194 = vmatpush2.msra.mxu0 0.0
    %1195 = vmatprep.subr.mxu0 0.0
    %1196 = vmatpush2.msra.mxu0 0.0
    %1197 = vmatprep.mubr.f32.mxu0 0.0
    %1198 = vmatmul.mubr.f32.gmra.mxu0 %v1131
    %v1199 = vpop.f32.mrf.mxu0
    %v1200 = vadd.f32 0.0, %v1199
    %v1201 = vpop.f32.mrf.mxu0
    %1202 = vdwg.mxu0
    %v1203 = vmul.f32 %v1111, %v1111
    %v1204 = vmul.f32 %v1113, %v1113
    %v1205 = vmul.f32 %v1115, %v1115
    %v1206 = vmul.f32 %v1117, %v1117
    %v1207 = vmul.f32 %v1119, %v1119
    %v1208 = vmul.f32 %v1121, %v1121
    %v1209 = vmul.f32 %v1123, %v1123
    %v1210 = vmul.f32 %v1125, %v1125
    %v1211 = vmul.f32 %v1127, %v1127
    %1212 = vmatprep.subr.mxu0 0.0
    %1213 = vmatpush1.msra.mxu0 0.0
    %1214 = vmatprep.subr.mxu0 0.0
    %1215 = vmatpush1.msra.mxu0 0.0
    %1216 = vmatprep.subr.mxu0 0.0
    %1217 = vmatpush1.msra.mxu0 0.0
    %1218 = vmatprep.subr.mxu0 0.0
    %1219 = vmatpush1.msra.mxu0 0.0
    %1220 = vmatprep.subr.mxu0 0.0
    %1221 = vmatpush1.msra.mxu0 0.0
    %1222 = vmatprep.subr.mxu0 0.0
    %1223 = vmatpush1.msra.mxu0 0.0
    %1224 = vmatprep.subr.mxu0 0.0
    %1225 = vmatpush1.msra.mxu0 0.0
    %1226 = vmatprep.subr.mxu0 0.0
    %1227 = vmatpush1.msra.mxu0 %v1211
    %1228 = vmatprep.subr.mxu0 0.0
    %1229 = vmatpush1.msra.mxu0 %v1210
    %1230 = vmatprep.subr.mxu0 0.0
    %1231 = vmatpush1.msra.mxu0 %v1209
    %1232 = vmatprep.subr.mxu0 0.0
    %1233 = vmatpush1.msra.mxu0 %v1208
    %1234 = vmatprep.subr.mxu0 0.0
    %1235 = vmatpush1.msra.mxu0 %v1207
    %1236 = vmatprep.subr.mxu0 0.0
    %1237 = vmatpush1.msra.mxu0 %v1206
    %1238 = vmatprep.subr.mxu0 0.0
    %1239 = vmatpush1.msra.mxu0 %v1205
    %1240 = vmatprep.subr.mxu0 0.0
    %1241 = vmatpush1.msra.mxu0 %v1204
    %1242 = vmatprep.subr.mxu0 0.0
    %1243 = vmatpush1.msra.mxu0 %v1203
    %1244 = vmatprep.subr.mxu0 0.0
    %1245 = vmatpush2.msra.mxu0 0.0
    %1246 = vmatprep.subr.mxu0 0.0
    %1247 = vmatpush2.msra.mxu0 0.0
    %1248 = vmatprep.subr.mxu0 0.0
    %1249 = vmatpush2.msra.mxu0 0.0
    %1250 = vmatprep.subr.mxu0 0.0
    %1251 = vmatpush2.msra.mxu0 0.0
    %1252 = vmatprep.subr.mxu0 0.0
    %1253 = vmatpush2.msra.mxu0 0.0
    %1254 = vmatprep.subr.mxu0 0.0
    %1255 = vmatpush2.msra.mxu0 0.0
    %1256 = vmatprep.subr.mxu0 0.0
    %1257 = vmatpush2.msra.mxu0 0.0
    %1258 = vmatprep.subr.mxu0 0.0
    %1259 = vmatpush2.msra.mxu0 0.0
    %1260 = vmatprep.subr.mxu0 0.0
    %1261 = vmatpush2.msra.mxu0 0.0
    %1262 = vmatprep.subr.mxu0 0.0
    %1263 = vmatpush2.msra.mxu0 0.0
    %1264 = vmatprep.subr.mxu0 0.0
    %1265 = vmatpush2.msra.mxu0 0.0
    %1266 = vmatprep.subr.mxu0 0.0
    %1267 = vmatpush2.msra.mxu0 0.0
    %1268 = vmatprep.subr.mxu0 0.0
    %1269 = vmatpush2.msra.mxu0 0.0
    %1270 = vmatprep.subr.mxu0 0.0
    %1271 = vmatpush2.msra.mxu0 0.0
    %1272 = vmatprep.subr.mxu0 0.0
    %1273 = vmatpush2.msra.mxu0 0.0
    %1274 = vmatprep.subr.mxu0 0.0
    %1275 = vmatpush2.msra.mxu0 0.0
    %1276 = vmatprep.mubr.f32.mxu0 0.0
    %1277 = vmatmul.mubr.f32.gmra.mxu0 %v1131
    %v1278 = vpop.f32.mrf.mxu0
    %v1279 = vadd.f32 0.0, %v1278
    %v1280 = vpop.f32.mrf.mxu0
    %1281 = vdwg.mxu0
    %v1282 = vld [vmem:[%s7] sm:$0xff]
    %1284 = vset.pattern.permute.xlu0 0
    %1285 = vperm.xlu0 %1284, %v1282
    %v1286 = vpop.permute.xlu0 %1285
    %v1288 = vmul.f32 %v1200, %v1286
    %v1289 = vmul.f32 %v1279, %v1286
    %v1290 = vmul.f32 %v1288, %v1288
    %v1291 = vsub.f32 %v1289, %v1290
    %v1292 = vmax.f32 %v1291, 0.0
    %v1293 = vrsqrt.pop %v1292
    %v1294 = vmul.f32 %v1292, %v1293
    %vm1295 = vcmp.eq.f32.partialorder %v1292, inf
    %v1296 = vsel %vm1295, %v1292, %v1294
    %vm1297 = vcmp.eq.f32.partialorder %v1292, 0.0
    %v1298 = vand.u32 %v1292, 2147483648
    %v1299 = vsel %vm1297, %v1298, %v1296
    %v1300 = vld [vmem:[%s5] sm:$0xff]
    %v1301 = vld [vmem:[%s5 + $0x8] sm:$0xff]
    %v1302 = vld [vmem:[%s5 + $0x10] sm:$0xff]
    %v1303 = vld [vmem:[%s5 + $0x18] sm:$0xff]
    %v1304 = vld [vmem:[%s5 + $0x20] sm:$0xff]
    %v1305 = vld [vmem:[%s5 + $0x28] sm:$0xff]
    %v1306 = vld [vmem:[%s5 + $0x30] sm:$0xff]
    %v1307 = vld [vmem:[%s5 + $0x38] sm:$0xff]
    %v1308 = vld [vmem:[%s5 + $0x40] sm:$0xff]
    %vm1309 = vcmask 64512
    %v1311 = vsel %vm1309, %v1300, 0
    %v1314 = vsel %vm1309, %v1301, 0
    %v1317 = vsel %vm1309, %v1302, 0
    %v1320 = vsel %vm1309, %v1303, 0
    %v1323 = vsel %vm1309, %v1304, 0
    %v1326 = vsel %vm1309, %v1305, 0
    %v1329 = vsel %vm1309, %v1306, 0
    %v1332 = vsel %vm1309, %v1307, 0
    %v1335 = vsel %vm1309, %v1308, 0
    %1337 = vmatprep.subr.mxu0 0.0
    %1338 = vmatpush1.msra.mxu0 0.0
    %1339 = vmatprep.subr.mxu0 0.0
    %1340 = vmatpush1.msra.mxu0 0.0
    %1341 = vmatprep.subr.mxu0 0.0
    %1342 = vmatpush1.msra.mxu0 0.0
    %1343 = vmatprep.subr.mxu0 0.0
    %1344 = vmatpush1.msra.mxu0 0.0
    %1345 = vmatprep.subr.mxu0 0.0
    %1346 = vmatpush1.msra.mxu0 0.0
    %1347 = vmatprep.subr.mxu0 0.0
    %1348 = vmatpush1.msra.mxu0 0.0
    %1349 = vmatprep.subr.mxu0 0.0
    %1350 = vmatpush1.msra.mxu0 0.0
    %1351 = vmatprep.subr.mxu0 0.0
    %1352 = vmatpush1.msra.mxu0 0.0
    %1353 = vmatprep.subr.mxu0 0.0
    %1354 = vmatpush1.msra.mxu0 0.0
    %1355 = vmatprep.subr.mxu0 0.0
    %1356 = vmatpush1.msra.mxu0 0.0
    %1357 = vmatprep.subr.mxu0 0.0
    %1358 = vmatpush1.msra.mxu0 0.0
    %1359 = vmatprep.subr.mxu0 0.0
    %1360 = vmatpush1.msra.mxu0 0.0
    %1361 = vmatprep.subr.mxu0 0.0
    %1362 = vmatpush1.msra.mxu0 0.0
    %1363 = vmatprep.subr.mxu0 0.0
    %1364 = vmatpush1.msra.mxu0 0.0
    %1365 = vmatprep.subr.mxu0 0.0
    %1366 = vmatpush1.msra.mxu0 0.0
    %1367 = vmatprep.subr.mxu0 0.0
    %1368 = vmatpush1.msra.mxu0 %v1288
    %1369 = vmatprep.subr.mxu0 0.0
    %1370 = vmatpush2.msra.mxu0 0.0
    %1371 = vmatprep.subr.mxu0 0.0
    %1372 = vmatpush2.msra.mxu0 0.0
    %1373 = vmatprep.subr.mxu0 0.0
    %1374 = vmatpush2.msra.mxu0 0.0
    %1375 = vmatprep.subr.mxu0 0.0
    %1376 = vmatpush2.msra.mxu0 0.0
    %1377 = vmatprep.subr.mxu0 0.0
    %1378 = vmatpush2.msra.mxu0 0.0
    %1379 = vmatprep.subr.mxu0 0.0
    %1380 = vmatpush2.msra.mxu0 0.0
    %1381 = vmatprep.subr.mxu0 0.0
    %1382 = vmatpush2.msra.mxu0 0.0
    %1383 = vmatprep.subr.mxu0 0.0
    %1384 = vmatpush2.msra.mxu0 0.0
    %1385 = vmatprep.subr.mxu0 0.0
    %1386 = vmatpush2.msra.mxu0 0.0
    %1387 = vmatprep.subr.mxu0 0.0
    %1388 = vmatpush2.msra.mxu0 0.0
    %1389 = vmatprep.subr.mxu0 0.0
    %1390 = vmatpush2.msra.mxu0 0.0
    %1391 = vmatprep.subr.mxu0 0.0
    %1392 = vmatpush2.msra.mxu0 0.0
    %1393 = vmatprep.subr.mxu0 0.0
    %1394 = vmatpush2.msra.mxu0 0.0
    %1395 = vmatprep.subr.mxu0 0.0
    %1396 = vmatpush2.msra.mxu0 0.0
    %1397 = vmatprep.subr.mxu0 0.0
    %1398 = vmatpush2.msra.mxu0 0.0
    %1399 = vmatprep.subr.mxu0 0.0
    %1400 = vmatpush2.msra.mxu0 0.0
    %1401 = vmatprep.mubr.f32.mxu0 0.0
    %1402 = vmatmul.mubr.f32.gmra.mxu0 %v1311
    %v1403 = vpop.f32.mrf.mxu0
    %v1404 = vadd.f32 0.0, %v1403
    %v1405 = vpop.f32.mrf.mxu0
    %1406 = vmatprep.mubr.f32.mxu0 0.0
    %1407 = vmatmul.mubr.f32.gmra.mxu0 %v1314
    %v1408 = vpop.f32.mrf.mxu0
    %v1409 = vadd.f32 0.0, %v1408
    %v1410 = vpop.f32.mrf.mxu0
    %1411 = vmatprep.mubr.f32.mxu0 0.0
    %1412 = vmatmul.mubr.f32.gmra.mxu0 %v1317
    %v1413 = vpop.f32.mrf.mxu0
    %v1414 = vadd.f32 0.0, %v1413
    %v1415 = vpop.f32.mrf.mxu0
    %1416 = vmatprep.mubr.f32.mxu0 0.0
    %1417 = vmatmul.mubr.f32.gmra.mxu0 %v1320
    %v1418 = vpop.f32.mrf.mxu0
    %v1419 = vadd.f32 0.0, %v1418
    %v1420 = vpop.f32.mrf.mxu0
    %1421 = vmatprep.mubr.f32.mxu0 0.0
    %1422 = vmatmul.mubr.f32.gmra.mxu0 %v1323
    %v1423 = vpop.f32.mrf.mxu0
    %v1424 = vadd.f32 0.0, %v1423
    %v1425 = vpop.f32.mrf.mxu0
    %1426 = vmatprep.mubr.f32.mxu0 0.0
    %1427 = vmatmul.mubr.f32.gmra.mxu0 %v1326
    %v1428 = vpop.f32.mrf.mxu0
    %v1429 = vadd.f32 0.0, %v1428
    %v1430 = vpop.f32.mrf.mxu0
    %1431 = vmatprep.mubr.f32.mxu0 0.0
    %1432 = vmatmul.mubr.f32.gmra.mxu0 %v1329
    %v1433 = vpop.f32.mrf.mxu0
    %v1434 = vadd.f32 0.0, %v1433
    %v1435 = vpop.f32.mrf.mxu0
    %1436 = vmatprep.mubr.f32.mxu0 0.0
    %1437 = vmatmul.mubr.f32.gmra.mxu0 %v1332
    %v1438 = vpop.f32.mrf.mxu0
    %v1439 = vadd.f32 0.0, %v1438
    %v1440 = vpop.f32.mrf.mxu0
    %1441 = vmatprep.mubr.f32.mxu0 0.0
    %1442 = vmatmul.mubr.f32.gmra.mxu0 %v1335
    %v1443 = vpop.f32.mrf.mxu0
    %v1444 = vadd.f32 0.0, %v1443
    %v1445 = vpop.f32.mrf.mxu0
    %1446 = vdwg.mxu0
    %v1447 = vsub.f32 %v1111, %v1404
    %v1448 = vsub.f32 %v1113, %v1409
    %v1449 = vsub.f32 %v1115, %v1414
    %v1450 = vsub.f32 %v1117, %v1419
    %v1451 = vsub.f32 %v1119, %v1424
    %v1452 = vsub.f32 %v1121, %v1429
    %v1453 = vsub.f32 %v1123, %v1434
    %v1454 = vsub.f32 %v1125, %v1439
    %v1455 = vsub.f32 %v1127, %v1444
    %1456 = vmatprep.subr.mxu0 0.0
    %1457 = vmatpush1.msra.mxu0 0.0
    %1458 = vmatprep.subr.mxu0 0.0
    %1459 = vmatpush1.msra.mxu0 0.0
    %1460 = vmatprep.subr.mxu0 0.0
    %1461 = vmatpush1.msra.mxu0 0.0
    %1462 = vmatprep.subr.mxu0 0.0
    %1463 = vmatpush1.msra.mxu0 0.0
    %1464 = vmatprep.subr.mxu0 0.0
    %1465 = vmatpush1.msra.mxu0 0.0
    %1466 = vmatprep.subr.mxu0 0.0
    %1467 = vmatpush1.msra.mxu0 0.0
    %1468 = vmatprep.subr.mxu0 0.0
    %1469 = vmatpush1.msra.mxu0 0.0
    %1470 = vmatprep.subr.mxu0 0.0
    %1471 = vmatpush1.msra.mxu0 0.0
    %1472 = vmatprep.subr.mxu0 0.0
    %1473 = vmatpush1.msra.mxu0 0.0
    %1474 = vmatprep.subr.mxu0 0.0
    %1475 = vmatpush1.msra.mxu0 0.0
    %1476 = vmatprep.subr.mxu0 0.0
    %1477 = vmatpush1.msra.mxu0 0.0
    %1478 = vmatprep.subr.mxu0 0.0
    %1479 = vmatpush1.msra.mxu0 0.0
    %1480 = vmatprep.subr.mxu0 0.0
    %1481 = vmatpush1.msra.mxu0 0.0
    %1482 = vmatprep.subr.mxu0 0.0
    %1483 = vmatpush1.msra.mxu0 0.0
    %1484 = vmatprep.subr.mxu0 0.0
    %1485 = vmatpush1.msra.mxu0 0.0
    %1486 = vmatprep.subr.mxu0 0.0
    %1487 = vmatpush1.msra.mxu0 %v1299
    %1488 = vmatprep.subr.mxu0 0.0
    %1489 = vmatpush2.msra.mxu0 0.0
    %1490 = vmatprep.subr.mxu0 0.0
    %1491 = vmatpush2.msra.mxu0 0.0
    %1492 = vmatprep.subr.mxu0 0.0
    %1493 = vmatpush2.msra.mxu0 0.0
    %1494 = vmatprep.subr.mxu0 0.0
    %1495 = vmatpush2.msra.mxu0 0.0
    %1496 = vmatprep.subr.mxu0 0.0
    %1497 = vmatpush2.msra.mxu0 0.0
    %1498 = vmatprep.subr.mxu0 0.0
    %1499 = vmatpush2.msra.mxu0 0.0
    %1500 = vmatprep.subr.mxu0 0.0
    %1501 = vmatpush2.msra.mxu0 0.0
    %1502 = vmatprep.subr.mxu0 0.0
    %1503 = vmatpush2.msra.mxu0 0.0
    %1504 = vmatprep.subr.mxu0 0.0
    %1505 = vmatpush2.msra.mxu0 0.0
    %1506 = vmatprep.subr.mxu0 0.0
    %1507 = vmatpush2.msra.mxu0 0.0
    %1508 = vmatprep.subr.mxu0 0.0
    %1509 = vmatpush2.msra.mxu0 0.0
    %1510 = vmatprep.subr.mxu0 0.0
    %1511 = vmatpush2.msra.mxu0 0.0
    %1512 = vmatprep.subr.mxu0 0.0
    %1513 = vmatpush2.msra.mxu0 0.0
    %1514 = vmatprep.subr.mxu0 0.0
    %1515 = vmatpush2.msra.mxu0 0.0
    %1516 = vmatprep.subr.mxu0 0.0
    %1517 = vmatpush2.msra.mxu0 0.0
    %1518 = vmatprep.subr.mxu0 0.0
    %1519 = vmatpush2.msra.mxu0 0.0
    %1520 = vmatprep.mubr.f32.mxu0 0.0
    %1521 = vmatmul.mubr.f32.gmra.mxu0 %v1311
    %v1522 = vpop.f32.mrf.mxu0
    %v1523 = vadd.f32 1e-08, %v1522
    %v1524 = vpop.f32.mrf.mxu0
    %1525 = vmatprep.mubr.f32.mxu0 0.0
    %1526 = vmatmul.mubr.f32.gmra.mxu0 %v1314
    %v1527 = vpop.f32.mrf.mxu0
    %v1528 = vadd.f32 1e-08, %v1527
    %v1529 = vpop.f32.mrf.mxu0
    %1530 = vmatprep.mubr.f32.mxu0 0.0
    %1531 = vmatmul.mubr.f32.gmra.mxu0 %v1317
    %v1532 = vpop.f32.mrf.mxu0
    %v1533 = vadd.f32 1e-08, %v1532
    %v1534 = vpop.f32.mrf.mxu0
    %1535 = vmatprep.mubr.f32.mxu0 0.0
    %1536 = vmatmul.mubr.f32.gmra.mxu0 %v1320
    %v1537 = vpop.f32.mrf.mxu0
    %v1538 = vadd.f32 1e-08, %v1537
    %v1539 = vpop.f32.mrf.mxu0
    %1540 = vmatprep.mubr.f32.mxu0 0.0
    %1541 = vmatmul.mubr.f32.gmra.mxu0 %v1323
    %v1542 = vpop.f32.mrf.mxu0
    %v1543 = vadd.f32 1e-08, %v1542
    %v1544 = vpop.f32.mrf.mxu0
    %1545 = vmatprep.mubr.f32.mxu0 0.0
    %1546 = vmatmul.mubr.f32.gmra.mxu0 %v1326
    %v1547 = vpop.f32.mrf.mxu0
    %v1548 = vadd.f32 1e-08, %v1547
    %v1549 = vpop.f32.mrf.mxu0
    %1550 = vmatprep.mubr.f32.mxu0 0.0
    %1551 = vmatmul.mubr.f32.gmra.mxu0 %v1329
    %v1552 = vpop.f32.mrf.mxu0
    %v1553 = vadd.f32 1e-08, %v1552
    %v1554 = vpop.f32.mrf.mxu0
    %1555 = vmatprep.mubr.f32.mxu0 0.0
    %1556 = vmatmul.mubr.f32.gmra.mxu0 %v1332
    %v1557 = vpop.f32.mrf.mxu0
    %v1558 = vadd.f32 1e-08, %v1557
    %v1559 = vpop.f32.mrf.mxu0
    %1560 = vmatprep.mubr.f32.mxu0 0.0
    %1561 = vmatmul.mubr.f32.gmra.mxu0 %v1335
    %v1562 = vpop.f32.mrf.mxu0
    %v1563 = vadd.f32 1e-08, %v1562
    %v1564 = vpop.f32.mrf.mxu0
    %1565 = vdwg.mxu0
    %v1566 = vrcp.pop %v1523
    %v1567 = vmul.f32 %v1447, %v1566
    %v1568 = vrcp.pop %v1528
    %v1569 = vmul.f32 %v1448, %v1568
    %v1570 = vrcp.pop %v1533
    %v1571 = vmul.f32 %v1449, %v1570
    %v1572 = vrcp.pop %v1538
    %v1573 = vmul.f32 %v1450, %v1572
    %v1574 = vrcp.pop %v1543
    %v1575 = vmul.f32 %v1451, %v1574
    %v1576 = vrcp.pop %v1548
    %v1577 = vmul.f32 %v1452, %v1576
    %v1578 = vrcp.pop %v1553
    %v1579 = vmul.f32 %v1453, %v1578
    %v1580 = vrcp.pop %v1558
    %v1581 = vmul.f32 %v1454, %v1580
    %v1582 = vrcp.pop %v1563
    %v1583 = vmul.f32 %v1455, %v1582
    %v1584 = vld [vmem:[%s8] sm:$0xff]
    %v1585 = vld [vmem:[%s8 + $0x8] sm:$0xff]
    %v1586 = vld [vmem:[%s8 + $0x10] sm:$0xff]
    %v1587 = vld [vmem:[%s8 + $0x18] sm:$0xff]
    %v1588 = vld [vmem:[%s8 + $0x20] sm:$0xff]
    %v1589 = vld [vmem:[%s8 + $0x28] sm:$0xff]
    %v1590 = vld [vmem:[%s8 + $0x30] sm:$0xff]
    %v1591 = vld [vmem:[%s8 + $0x38] sm:$0xff]
    %v1592 = vld [vmem:[%s8 + $0x40] sm:$0xff]
    %1594 = vset.pattern.permute.xlu0 0
    %1595 = vperm.xlu0 %1594, %v1584
    %v1596 = vpop.permute.xlu0 %1595
    %1599 = vset.pattern.permute.xlu0 0
    %1600 = vperm.xlu0 %1599, %v1585
    %v1601 = vpop.permute.xlu0 %1600
    %1604 = vset.pattern.permute.xlu0 0
    %1605 = vperm.xlu0 %1604, %v1586
    %v1606 = vpop.permute.xlu0 %1605
    %1609 = vset.pattern.permute.xlu0 0
    %1610 = vperm.xlu0 %1609, %v1587
    %v1611 = vpop.permute.xlu0 %1610
    %1614 = vset.pattern.permute.xlu0 0
    %1615 = vperm.xlu0 %1614, %v1588
    %v1616 = vpop.permute.xlu0 %1615
    %1619 = vset.pattern.permute.xlu0 0
    %1620 = vperm.xlu0 %1619, %v1589
    %v1621 = vpop.permute.xlu0 %1620
    %1624 = vset.pattern.permute.xlu0 0
    %1625 = vperm.xlu0 %1624, %v1590
    %v1626 = vpop.permute.xlu0 %1625
    %1629 = vset.pattern.permute.xlu0 0
    %1630 = vperm.xlu0 %1629, %v1591
    %v1631 = vpop.permute.xlu0 %1630
    %1634 = vset.pattern.permute.xlu0 0
    %1635 = vperm.xlu0 %1634, %v1592
    %v1636 = vpop.permute.xlu0 %1635
    %v1638 = vmul.f32 %v1567, %v1596
    %v1639 = vmul.f32 %v1569, %v1601
    %v1640 = vmul.f32 %v1571, %v1606
    %v1641 = vmul.f32 %v1573, %v1611
    %v1642 = vmul.f32 %v1575, %v1616
    %v1643 = vmul.f32 %v1577, %v1621
    %v1644 = vmul.f32 %v1579, %v1626
    %v1645 = vmul.f32 %v1581, %v1631
    %v1646 = vmul.f32 %v1583, %v1636
    %1647 = vst [vmem:[#allocation10] sm:$0xff] %v1638
    %1648 = vst [vmem:[#allocation10 + $0x8] sm:$0xff] %v1639
    %1649 = vst [vmem:[#allocation10 + $0x10] sm:$0xff] %v1640
    %1650 = vst [vmem:[#allocation10 + $0x18] sm:$0xff] %v1641
    %1651 = vst [vmem:[#allocation10 + $0x20] sm:$0xff] %v1642
    %1652 = vst [vmem:[#allocation10 + $0x28] sm:$0xff] %v1643
    %1653 = vst [vmem:[#allocation10 + $0x30] sm:$0xff] %v1644
    %1654 = vst [vmem:[#allocation10 + $0x38] sm:$0xff] %v1645
    %1655 = vst [vmem:[#allocation10 + $0x40] sm:$0xff] %v1646
    // Predicated region
    $region54: #{tpu_custom_call.1} parent=1 // pred_check
      _
    $region55: #{tpu_custom_call.1} parent=1 // pred_check_branch
      %1657 = sbr.rel (0) target = $region57
    $region56: #{tpu_custom_call.1} parent=1 // pred_region
      %s1659 = ssub.s32 1152, 1152
      %1660 = vsyncadd [#allocation4], %s1659
      %s1661 = sshll.u32 [#allocation10], 4
      %s1662 = int_to_ptr.vmem [resolvable:$true] %s1661
      %1667 = dma.vmem_to_hbm [thread:$0]  %s1662, 1152, %s9, [#allocation4], 128, 128, 8
    $region57: #{tpu_custom_call.1} parent=1 // pred_fallthru
      _
    // Predicated region
    $region58: #{tpu_custom_call.1} parent=1 // pred_check
      _
    $region59: #{tpu_custom_call.1} parent=1 // pred_check_branch
      %1669 = sbr.rel (0) target = $region61
    $region60: #{tpu_custom_call.1} parent=1 // pred_region
      %1670 = dma.done [#allocation4], 1152
    $region61: #{tpu_custom_call.1} parent=1 // pred_fallthru
      _
    %1671 = vsyncpa [#allocation3], 1
    %1672 = vsyncpa [#allocation6], 1
    %1673 = vsyncpa [#allocation9], 1
    %1674 = vsyncpa [#allocation4], 1

</llo_original>
